<compile_context>
chip_gen: v7x
topology: tpu7x:2x2x1
jax: 0.10.0
libtpu: 0.0.40
codegen_flags: <defaults>
</compile_context>

<pallas_src>
import functools

import jax
import jax.numpy as jnp
from jax.experimental import pallas as pl
from jax.experimental.pallas import tpu as pltpu

LN_EPS = 1e-5                       # torch.nn.LayerNorm default
VMEM_LIMIT = 64 * 1024 * 1024       # scoped-VMEM budget (<= physical on v5e/v6e/v7x)
NEG_BIG = -1e30                     # finite mask value (avoids 0 * inf -> NaN)


# --------------------------------------------------------------------------
# In-kernel helpers
# --------------------------------------------------------------------------
def _gelu_tanh(x):
    # tanh-approximation GELU (torch default is exact erf GELU; difference is
    # well below the test tolerance and tanh runs on the otherwise-idle EUP slot).
    c = 0.7978845608028654  # sqrt(2/pi)
    return 0.5 * x * (1.0 + jnp.tanh(c * (x + 0.044715 * x * x * x)))


def _layernorm_f32(x_f32, g_ref, b_ref, eps):
    mean = jnp.mean(x_f32, axis=-1, keepdims=True)
    var = jnp.mean(jnp.square(x_f32 - mean), axis=-1, keepdims=True)
    y = (x_f32 - mean) * jax.lax.rsqrt(var + eps)
    return y * g_ref[...].astype(jnp.float32) + b_ref[...].astype(jnp.float32)


# --------------------------------------------------------------------------
# Pallas kernels
# --------------------------------------------------------------------------
def _ln_qkv_kernel(x_ref, g_ref, b_ref, w_ref, wb_ref, xln_ref, qkv_ref, *, eps):
    """x_ln = LN(x); qkv = x_ln @ W_qkv + b_qkv (fused; qkv emitted in bf16)."""
    x = x_ref[...].astype(jnp.float32)
    xln = _layernorm_f32(x, g_ref, b_ref, eps)
    xln_ref[...] = xln.astype(xln_ref.dtype)
    acc = jnp.dot(xln.astype(jnp.bfloat16), w_ref[...],
                  preferred_element_type=jnp.float32)
    qkv_ref[...] = (acc + wb_ref[...].astype(jnp.float32)).astype(qkv_ref.dtype)


def _flash_attn_kernel(q_ref, k_ref, v_ref, res_ref, wo_ref, bo_ref, o_ref,
                       m_sc, l_sc, acc_sc, *, num_heads, scale, seq_len):
    """Flash MHA over lane-dense (tq, H*D)/(tk, H*D) bf16 tiles; the output
    projection + bias + residual are fused into the finalize step."""
    ki = pl.program_id(2)

    @pl.when(ki == 0)
    def _init():
        m_sc[...] = jnp.full_like(m_sc, -jnp.inf)
        l_sc[...] = jnp.zeros_like(l_sc)
        acc_sc[...] = jnp.zeros_like(acc_sc)

    tq = q_ref.shape[1]
    e = q_ref.shape[2]
    tk = k_ref.shape[1]
    d = e // num_heads

    need_mask = (seq_len % tk) != 0            # static; compiled out when tiles divide
    if need_mask:
        kpos = ki * tk + jax.lax.broadcasted_iota(jnp.int32, (tq, tk), 1)
        kmask = kpos < seq_len
        vpos = ki * tk + jax.lax.broadcasted_iota(jnp.int32, (tk, 1), 0)
        vmask = vpos < seq_len

    for h in range(num_heads):                 # static unroll (num_heads small)
        lo, hi = h * d, (h + 1) * d
        qh = q_ref[0, :, lo:hi]                # (tq, d) bf16
        kh = k_ref[0, :, lo:hi]                # (tk, d) bf16
        vh = v_ref[0, :, lo:hi]                # (tk, d) bf16

        s = jax.lax.dot_general(
            qh, kh, (((1,), (1,)), ((), ())),
            preferred_element_type=jnp.float32) * scale          # (tq, tk) f32
        if need_mask:
            s = jnp.where(kmask, s, NEG_BIG)
            vh = jnp.where(vmask, vh, jnp.zeros_like(vh))

        m_prev = m_sc[h]                                          # (tq, 1)
        m_new = jnp.maximum(m_prev, jnp.max(s, axis=-1, keepdims=True))
        alpha = jnp.exp(m_prev - m_new)
        p = jnp.exp(s - m_new)
        l_sc[h] = alpha * l_sc[h] + jnp.sum(p, axis=-1, keepdims=True)
        acc_sc[h] = alpha * acc_sc[h] + jnp.dot(
            p.astype(jnp.bfloat16), vh, preferred_element_type=jnp.float32)
        m_sc[h] = m_new

    @pl.when(ki == pl.num_programs(2) - 1)
    def _finalize():
        # out = concat_h(ctx_h) @ W_o + b_o + x_ln
        #     = sum_h ctx_h @ W_o[h*d:(h+1)*d, :] + b_o + x_ln   (no concat needed)
        out = bo_ref[...].astype(jnp.float32) + res_ref[0].astype(jnp.float32)
        for h in range(num_heads):
            lo, hi = h * d, (h + 1) * d
            inv_l = pl.reciprocal(l_sc[h], approx=True)           # EUP, ~free
            ctx = (acc_sc[h] * inv_l).astype(jnp.bfloat16)        # (tq, d)
            out = out + jnp.dot(ctx, wo_ref[lo:hi, :],
                                preferred_element_type=jnp.float32)
        o_ref[0] = out.astype(o_ref.dtype)


def _ff_kernel(x_ref, g_ref, b_ref, w1_ref, b1_ref, w2_ref, b2_ref, o_ref, *, eps):
    """out = Linear(GELU(Linear(LN(x)))) + x  -- whole FF block in one kernel."""
    x = x_ref[...].astype(jnp.float32)
    xln = _layernorm_f32(x, g_ref, b_ref, eps)
    h = jnp.dot(xln.astype(jnp.bfloat16), w1_ref[...],
                preferred_element_type=jnp.float32)
    h = _gelu_tanh(h + b1_ref[...].astype(jnp.float32))
    y = jnp.dot(h.astype(jnp.bfloat16), w2_ref[...],
                preferred_element_type=jnp.float32)
    y = y + b2_ref[...].astype(jnp.float32)
    o_ref[...] = (y + x).astype(o_ref.dtype)


# --------------------------------------------------------------------------
# pallas_call wrappers
# --------------------------------------------------------------------------
def _row_tile(m, target=1024):
    """Row tile <= target; guarantees >=2 grid programs when m > 8 so the
    'parallel' row axis can be split across v7x's two TensorCores."""
    if m <= 8:
        return m
    half = ((m + 1) // 2 + 7) // 8 * 8      # ceil(m/2) rounded up to a multiple of 8
    return min(target, half)


def ln_qkv_proj(x2d, g, b, w_qkv, b_qkv):
    m, e = x2d.shape
    n = w_qkv.shape[1]
    tm = _row_tile(m)
    tn = min(n, 2048)                        # tile wide QKV weight (v7x VMEM guard)
    grid = (pl.cdiv(m, tm), pl.cdiv(n, tn))
    return pl.pallas_call(
        functools.partial(_ln_qkv_kernel, eps=LN_EPS),
        out_shape=(jax.ShapeDtypeStruct((m, e), x2d.dtype),
                   jax.ShapeDtypeStruct((m, n), jnp.bfloat16)),
        grid_spec=pltpu.PrefetchScalarGridSpec(
            num_scalar_prefetch=0,
            grid=grid,
            in_specs=[
                pl.BlockSpec((tm, e), lambda i, j: (i, 0)),
                pl.BlockSpec((1, e), lambda i, j: (0, 0)),
                pl.BlockSpec((1, e), lambda i, j: (0, 0)),
                pl.BlockSpec((e, tn), lambda i, j: (0, j)),
                pl.BlockSpec((1, tn), lambda i, j: (0, j)),
            ],
            out_specs=[pl.BlockSpec((tm, e), lambda i, j: (i, 0)),
                       pl.BlockSpec((tm, tn), lambda i, j: (i, j))],
        ),
        compiler_params=pltpu.CompilerParams(
            dimension_semantics=("parallel", "arbitrary"),
            vmem_limit_bytes=VMEM_LIMIT),
    )(x2d, g.reshape(1, e), b.reshape(1, e),
      w_qkv.astype(jnp.bfloat16), b_qkv.reshape(1, n))


def flash_mha_proj(qkv, xln3, w_o, b_o, *, num_heads, q_tile=256, kv_tile=128):
    """qkv: (b, s, 3E) packed bf16; xln3: (b, s, E) residual.
    Returns x_mha = attn(qkv) @ W_o + b_o + x_ln   (projection fused in-kernel)."""
    bsz, seq, e3 = qkv.shape
    e = e3 // 3
    d = e // num_heads
    tq = min(q_tile, seq)
    tk = min(kv_tile, seq)
    grid = (bsz, pl.cdiv(seq, tq), pl.cdiv(seq, tk))
    kernel = functools.partial(_flash_attn_kernel, num_heads=num_heads,
                               scale=1.0 / (d ** 0.5), seq_len=seq)
    return pl.pallas_call(
        kernel,
        out_shape=jax.ShapeDtypeStruct((bsz, seq, e), xln3.dtype),
        grid_spec=pltpu.PrefetchScalarGridSpec(
            num_scalar_prefetch=0,
            grid=grid,
            in_specs=[
                # packed qkv passed 3x; last-dim block index selects Q/K/V
                pl.BlockSpec((1, tq, e), lambda bi, qi, ki: (bi, qi, 0)),
                pl.BlockSpec((1, tk, e), lambda bi, qi, ki: (bi, ki, 1)),
                pl.BlockSpec((1, tk, e), lambda bi, qi, ki: (bi, ki, 2)),
                # residual (constant over ki -> stays resident in VMEM)
                pl.BlockSpec((1, tq, e), lambda bi, qi, ki: (bi, qi, 0)),
                pl.BlockSpec((e, e), lambda bi, qi, ki: (0, 0)),   # W_o
                pl.BlockSpec((1, e), lambda bi, qi, ki: (0, 0)),   # b_o
            ],
            out_specs=pl.BlockSpec((1, tq, e), lambda bi, qi, ki: (bi, qi, 0)),
            scratch_shapes=[
                pltpu.VMEM((num_heads, tq, 1), jnp.float32),   # running max
                pltpu.VMEM((num_heads, tq, 1), jnp.float32),   # running sum
                pltpu.VMEM((num_heads, tq, d), jnp.float32),   # accumulator
            ],
        ),
        compiler_params=pltpu.CompilerParams(
            dimension_semantics=("parallel", "parallel", "arbitrary"),
            vmem_limit_bytes=VMEM_LIMIT),
    )(qkv, qkv, qkv, xln3, w_o.astype(jnp.bfloat16), b_o.reshape(1, e))


def ff_block(x2d, g, b, w1, b1, w2, b2):
    m, e = x2d.shape
    tm = _row_tile(m)
    # TODO(synk): for E >~ 2048 on v7x (64 MiB VMEM), tile w1/w2 along the hidden
    # dim with a reduction grid axis instead of loading them as single blocks.
    return pl.pallas_call(
        functools.partial(_ff_kernel, eps=LN_EPS),
        out_shape=jax.ShapeDtypeStruct((m, e), x2d.dtype),
        grid_spec=pltpu.PrefetchScalarGridSpec(
            num_scalar_prefetch=0,
            grid=(pl.cdiv(m, tm),),
            in_specs=[
                pl.BlockSpec((tm, e), lambda i: (i, 0)),
                pl.BlockSpec((1, e), lambda i: (0, 0)),
                pl.BlockSpec((1, e), lambda i: (0, 0)),
                pl.BlockSpec((e, e), lambda i: (0, 0)),
                pl.BlockSpec((1, e), lambda i: (0, 0)),
                pl.BlockSpec((e, e), lambda i: (0, 0)),
                pl.BlockSpec((1, e), lambda i: (0, 0)),
            ],
            out_specs=pl.BlockSpec((tm, e), lambda i: (i, 0)),
        ),
        compiler_params=pltpu.CompilerParams(
            dimension_semantics=("parallel",),
            vmem_limit_bytes=VMEM_LIMIT),
    )(x2d, g.reshape(1, e), b.reshape(1, e),
      w1.astype(jnp.bfloat16), b1.reshape(1, e),
      w2.astype(jnp.bfloat16), b2.reshape(1, e))


# --------------------------------------------------------------------------
# Module forward (mirrors SelfAttention.forward)
# --------------------------------------------------------------------------
def self_attention_forward(x, params, num_heads=4, use_pallas=True):
    bsz, seq, e = x.shape
    assert e % num_heads == 0
    if not use_pallas:
        return _reference(x, params, num_heads)
    rows = bsz * seq
    x2 = x.reshape(rows, e)
    # x_ln = LN(x); qkv = x_ln @ W_in + b_in  (fused, x_ln kept for the residual)
    xln2, qkv2 = ln_qkv_proj(x2, params["ln_g"], params["ln_b"],
                             params["w_qkv"], params["b_qkv"])
    # flash attention with fused output projection + residual:
    # x_mha = attn @ W_out + b_out + x_ln
    x_mha = flash_mha_proj(qkv2.reshape(bsz, seq, 3 * e),
                           xln2.reshape(bsz, seq, e),
                           params["w_o"], params["b_o"], num_heads=num_heads)
    # x_ff = Linear(GELU(Linear(LN(x_mha)))) + x_mha
    out2 = ff_block(x_mha.reshape(rows, e), params["ff_ln_g"], params["ff_ln_b"],
                    params["w1"], params["b1"], params["w2"], params["b2"])
    return out2.reshape(bsz, seq, e)


# Pure-JAX f32 reference (same math via XLA ops; exact erf GELU).
def _layer_norm_ref(x, g, b):
    mean = jnp.mean(x, axis=-1, keepdims=True)
    var = jnp.mean(jnp.square(x - mean), axis=-1, keepdims=True)
    return (x - mean) * jax.lax.rsqrt(var + LN_EPS) * g + b


def _reference(x, p, num_heads):
    bsz, seq, e = x.shape
    d = e // num_heads
    xln = _layer_norm_ref(x, p["ln_g"], p["ln_b"])
    qkv = xln @ p["w_qkv"] + p["b_qkv"]
    q, k, v = jnp.split(qkv, 3, axis=-1)

    def split_heads(t):
        return t.reshape(bsz, seq, num_heads, d).transpose(0, 2, 1, 3)

    qh, kh, vh = map(split_heads, (q, k, v))
    scores = jnp.einsum("bhqd,bhkd->bhqk", qh, kh) * (1.0 / d ** 0.5)
    probs = jax.nn.softmax(scores, axis=-1)
    ctx = jnp.einsum("bhqk,bhkd->bhqd", probs, vh)
    ctx = ctx.transpose(0, 2, 1, 3).reshape(bsz, seq, e)
    x_mha = ctx @ p["w_o"] + p["b_o"] + xln
    hln = _layer_norm_ref(x_mha, p["ff_ln_g"], p["ff_ln_b"])
    hmid = jax.nn.gelu(hln @ p["w1"] + p["b1"], approximate=False)
    return hmid @ p["w2"] + p["b2"] + x_mha


# --------------------------------------------------------------------------
# Deterministic parameter init (shapes from the PyTorch __init__)
# --------------------------------------------------------------------------
def init_params(key, e):
    ks = jax.random.split(key, 12)

    def dense(k, fan_in, fan_out):
        return jax.random.normal(k, (fan_in, fan_out), jnp.float32) * 0.02

    def bias(k, n):
        return jax.random.normal(k, (n,), jnp.float32) * 0.02

    return dict(
        # self.ln
        ln_g=1.0 + 0.1 * jax.random.normal(ks[0], (e,), jnp.float32),
        ln_b=0.1 * jax.random.normal(ks[1], (e,), jnp.float32),
        # self.mha: packed in_proj (stored transposed: (E, 3E)), out_proj
        w_qkv=dense(ks[2], e, 3 * e), b_qkv=bias(ks[3], 3 * e),
        w_o=dense(ks[4], e, e), b_o=bias(ks[5], e),
        # self.ff_layer: LayerNorm, Linear, GELU, Linear
        ff_ln_g=1.0 + 0.1 * jax.random.normal(ks[6], (e,), jnp.float32),
        ff_ln_b=0.1 * jax.random.normal(ks[7], (e,), jnp.float32),
        w1=dense(ks[8], e, e), b1=bias(ks[9], e),
        w2=dense(ks[10], e, e), b2=bias(ks[11], e),
    )


# --------------------------------------------------------------------------
if __name__ == "__main__":
    key = jax.random.PRNGKey(0)
    B, S, E, H = 2, 128, 256, 4      # lane-dense emb_dim; num_heads=4 (module default)

    kp, kx = jax.random.split(key)
    params = init_params(kp, E)
    x = jax.random.normal(kx, (B, S, E), jnp.float32)

    out = self_attention_forward(x, params, num_heads=H, use_pallas=True)
    out = jax.block_until_ready(out)
    assert out.shape == x.shape and out.dtype == x.dtype

    ref = self_attention_forward(x, params, num_heads=H, use_pallas=False)
    ref = jax.block_until_ready(ref)
    max_err = float(jnp.max(jnp.abs(out - ref)))
    # bf16 MXU dots + tanh-GELU + approx reciprocal vs f32/erf reference
    assert max_err < 2e-2, f"mismatch vs reference: {max_err}"

    print("KERNEL_OK")
</pallas_src>

<mosaic_0001>
module attributes {stable_mosaic.version = 11 : i64} {
  func.func @_ln_qkv_kernel(%arg0: i32, %arg1: i32, %arg2: memref<128x256xf32, #tpu.memory_space<vmem>>, %arg3: memref<1x256xf32, #tpu.memory_space<vmem>>, %arg4: memref<1x256xf32, #tpu.memory_space<vmem>>, %arg5: memref<256x768xbf16, #tpu.memory_space<vmem>>, %arg6: memref<1x768xf32, #tpu.memory_space<vmem>>, %arg7: memref<128x256xf32, #tpu.memory_space<vmem>>, %arg8: memref<128x768xbf16, #tpu.memory_space<vmem>>) attributes {dimension_semantics = [#tpu.dimension_semantics<parallel>, #tpu.dimension_semantics<arbitrary>], iteration_bounds = array<i64: 2, 1>, scalar_prefetch = 0 : i64, scratch_operands = 0 : i64, tpu.core_type = #tpu.core_type<tc>, window_params = [{transform_indices = @transform_0, window_bounds = array<i64: 128, 256>}, {pipeline_mode = #tpu.pipeline_mode<synchronous>, transform_indices = @transform_1, window_bounds = array<i64: 1, 256>}, {pipeline_mode = #tpu.pipeline_mode<synchronous>, transform_indices = @transform_2, window_bounds = array<i64: 1, 256>}, {transform_indices = @transform_3, window_bounds = array<i64: 256, 768>}, {transform_indices = @transform_4, window_bounds = array<i64: 1, 768>}, {transform_indices = @transform_5, window_bounds = array<i64: 128, 256>}, {transform_indices = @transform_6, window_bounds = array<i64: 128, 768>}]} {
    %c0 = arith.constant 0 : index
    %c0_0 = arith.constant 0 : index
    %0 = vector.load %arg2[%c0, %c0_0] : memref<128x256xf32, #tpu.memory_space<vmem>>, vector<128x256xf32>
    %cst = arith.constant dense<0.000000e+00> : vector<128xf32>
    %1 = vector.multi_reduction <add>, %0, %cst [1] : vector<128x256xf32> to vector<128xf32>
    %2 = vector.shape_cast %1 : vector<128xf32> to vector<128x1xf32>
    %cst_1 = arith.constant 2.560000e+02 : f32
    %3 = vector.broadcast %cst_1 : f32 to vector<128x1xf32>
    %4 = arith.divf %2, %3 : vector<128x1xf32>
    %5 = vector.broadcast %4 : vector<128x1xf32> to vector<128x256xf32>
    %6 = arith.subf %0, %5 : vector<128x256xf32>
    %7 = arith.mulf %6, %6 : vector<128x256xf32>
    %cst_2 = arith.constant dense<0.000000e+00> : vector<128xf32>
    %8 = vector.multi_reduction <add>, %7, %cst_2 [1] : vector<128x256xf32> to vector<128xf32>
    %9 = vector.shape_cast %8 : vector<128xf32> to vector<128x1xf32>
    %cst_3 = arith.constant 2.560000e+02 : f32
    %10 = vector.broadcast %cst_3 : f32 to vector<128x1xf32>
    %11 = arith.divf %9, %10 : vector<128x1xf32>
    %12 = vector.broadcast %4 : vector<128x1xf32> to vector<128x256xf32>
    %13 = arith.subf %0, %12 : vector<128x256xf32>
    %cst_4 = arith.constant 9.99999974E-6 : f32
    %14 = vector.broadcast %cst_4 : f32 to vector<128x1xf32>
    %15 = arith.addf %11, %14 : vector<128x1xf32>
    %16 = math.rsqrt %15 : vector<128x1xf32>
    %17 = vector.broadcast %16 : vector<128x1xf32> to vector<128x256xf32>
    %18 = arith.mulf %13, %17 : vector<128x256xf32>
    %c0_5 = arith.constant 0 : index
    %c0_6 = arith.constant 0 : index
    %19 = vector.load %arg3[%c0_5, %c0_6] : memref<1x256xf32, #tpu.memory_space<vmem>>, vector<1x256xf32>
    %20 = vector.broadcast %19 : vector<1x256xf32> to vector<128x256xf32>
    %21 = arith.mulf %18, %20 : vector<128x256xf32>
    %c0_7 = arith.constant 0 : index
    %c0_8 = arith.constant 0 : index
    %22 = vector.load %arg4[%c0_7, %c0_8] : memref<1x256xf32, #tpu.memory_space<vmem>>, vector<1x256xf32>
    %23 = vector.broadcast %22 : vector<1x256xf32> to vector<128x256xf32>
    %24 = arith.addf %21, %23 : vector<128x256xf32>
    %c0_9 = arith.constant 0 : index
    %c0_10 = arith.constant 0 : index
    %25 = vector.load %arg7[%c0_9, %c0_10] : memref<128x256xf32, #tpu.memory_space<vmem>>, vector<128x256xf32>
    tpu.vector_store %arg7[%c0_9, %c0_10], %24 {strides = array<i32>} : memref<128x256xf32, #tpu.memory_space<vmem>>, vector<128x256xf32>,
    %26 = arith.truncf %24 : vector<128x256xf32> to vector<128x256xbf16>
    %c0_11 = arith.constant 0 : index
    %c0_12 = arith.constant 0 : index
    %27 = vector.load %arg5[%c0_11, %c0_12] : memref<256x768xbf16, #tpu.memory_space<vmem>>, vector<256x768xbf16>
    %cst_13 = arith.constant dense<0.000000e+00> : vector<128x768xf32>
    %28 = tpu.matmul %26, %27, %cst_13 {dimension_numbers = #tpu.dot_dimension_numbers<[1], [0], [0], [1], [0, 0, 1, 1], [], []>} : vector<128x256xbf16>, vector<256x768xbf16>, vector<128x768xf32> -> vector<128x768xf32>
    %c0_14 = arith.constant 0 : index
    %c0_15 = arith.constant 0 : index
    %29 = vector.load %arg6[%c0_14, %c0_15] : memref<1x768xf32, #tpu.memory_space<vmem>>, vector<1x768xf32>
    %30 = vector.broadcast %29 : vector<1x768xf32> to vector<128x768xf32>
    %31 = arith.addf %28, %30 : vector<128x768xf32>
    %32 = arith.truncf %31 : vector<128x768xf32> to vector<128x768xbf16>
    %c0_16 = arith.constant 0 : index
    %c0_17 = arith.constant 0 : index
    %33 = vector.load %arg8[%c0_16, %c0_17] : memref<128x768xbf16, #tpu.memory_space<vmem>>, vector<128x768xbf16>
    tpu.vector_store %arg8[%c0_16, %c0_17], %32 {strides = array<i32>} : memref<128x768xbf16, #tpu.memory_space<vmem>>, vector<128x768xbf16>,
    return
  }
  func.func @transform_0(%arg0: i32, %arg1: i32) -> (i32, i32) {
    %c0_i32 = arith.constant 0 : i32
    %c0_i32_0 = arith.constant 0 : i32
    return %arg0, %c0_i32 : i32, i32
  }
  func.func @transform_1(%arg0: i32, %arg1: i32) -> (i32, i32) {
    %c0_i32 = arith.constant 0 : i32
    %c0_i32_0 = arith.constant 0 : i32
    %c0_i32_1 = arith.constant 0 : i32
    return %c0_i32, %c0_i32_0 : i32, i32
  }
  func.func @transform_2(%arg0: i32, %arg1: i32) -> (i32, i32) {
    %c0_i32 = arith.constant 0 : i32
    %c0_i32_0 = arith.constant 0 : i32
    %c0_i32_1 = arith.constant 0 : i32
    return %c0_i32, %c0_i32_0 : i32, i32
  }
  func.func @transform_3(%arg0: i32, %arg1: i32) -> (i32, i32) {
    %c0_i32 = arith.constant 0 : i32
    %c0_i32_0 = arith.constant 0 : i32
    return %c0_i32, %arg1 : i32, i32
  }
  func.func @transform_4(%arg0: i32, %arg1: i32) -> (i32, i32) {
    %c0_i32 = arith.constant 0 : i32
    %c0_i32_0 = arith.constant 0 : i32
    return %c0_i32, %arg1 : i32, i32
  }
  func.func @transform_5(%arg0: i32, %arg1: i32) -> (i32, i32) {
    %c0_i32 = arith.constant 0 : i32
    %c0_i32_0 = arith.constant 0 : i32
    return %arg0, %c0_i32 : i32, i32
  }
  func.func @transform_6(%arg0: i32, %arg1: i32) -> (i32, i32) {
    %c0_i32 = arith.constant 0 : i32
    return %arg0, %arg1 : i32, i32
  }
}

</mosaic_0001>

<llo_original>
// kernel: tpu_custom_call.1
$region0: #{tpu_custom_call.1}
  #allocation0 [shape = 'u32[]', space=smem, size = 0x4, offset = 0x4, fixed_abs, tag = 'smem constant byte address 0x4 - core index']
  #allocation1 [shape = 'u32[144,128]{1,0:T(1,128)}', space=vmem, size = 0x12000, scoped, tag = 'internal scratch']
  %s0 = inlined_call_operand.hbm [shape: f32[256,256], index: 0, kind: input, shape index: {}]
  %s1 = inlined_call_operand.hbm [shape: f32[1,256], index: 1, kind: input, shape index: {}]
  %s2 = inlined_call_operand.hbm [shape: f32[1,256], index: 2, kind: input, shape index: {}]
  %s3 = inlined_call_operand.hbm [shape: bf16[256,768], index: 3, kind: input, shape index: {}]
  %s4 = inlined_call_operand.hbm [shape: f32[1,768], index: 4, kind: input, shape index: {}]
  %s5 = inlined_call_operand.hbm [shape: f32[256,256], index: 5, kind: output, shape index: {0}]
  %s6 = inlined_call_operand.hbm [shape: bf16[256,768], index: 6, kind: output, shape index: {1}]
  %7 = xla_tuple %s5, %s6
  %s8 = sld [smem:[#allocation0]]
  $region81: #{tpu_custom_call.1} parent=0
    _
  %s10 = ssub.s32 1, %s8
  %s11 = scalar_select 0, %s10, %s8
  $region1: #{tpu_custom_call.1} parent=0
    #allocation2 [shape = 'u8[262144]{0}', space=vmem, size = 0x40000, scoped, tag = 'input window, operand 0']
    #allocation3 [shape = 's32[2]{0}', space=sflag, size = 0x8, scoped, tag = 'scoped memory for tpu_custom_call.1']
    #allocation4 [shape = 's32[2]{0}', space=sflag, size = 0x8, scoped, tag = 'scoped memory for tpu_custom_call.1']
    #allocation5 [shape = 'u8[1024]{0}', space=vmem, size = 0x400, scoped, tag = 'input window, operand 1, single buffered']
    #allocation6 [shape = 's32[1]{0}', space=sflag, size = 0x4, scoped, tag = 'scoped memory for tpu_custom_call.1']
    #allocation7 [shape = 'u8[1024]{0}', space=vmem, size = 0x400, scoped, tag = 'input window, operand 2, single buffered']
    #allocation8 [shape = 'u8[393216]{0}', space=vmem, size = 0x60000, scoped, tag = 'input window, operand 3, single buffered']
    #allocation9 [shape = 's32[1]{0}', space=sflag, size = 0x4, scoped, tag = 'scoped memory for tpu_custom_call.1']
    #allocation10 [shape = 'u8[3072]{0}', space=vmem, size = 0xc00, scoped, tag = 'input window, operand 4, single buffered']
    #allocation11 [shape = 'u8[262144]{0}', space=vmem, size = 0x40000, scoped, tag = 'output window, operand 0']
    #allocation12 [shape = 'u8[393216]{0}', space=vmem, size = 0x60000, scoped, tag = 'output window, operand 1']
    #allocation13 [shape = 's32[2]{0}', space=sflag, size = 0x8, scoped, tag = 'scoped memory for tpu_custom_call.1']
    %12 = vsyncpa [#allocation3], 0
    %s13 = scalar_lea.sflag [#allocation3], 1
    %14 = vsyncpa %s13, 0
    %15 = vsyncpa [#allocation6], 0
    %16 = vsyncpa [#allocation9], 0
    %17 = vsyncpa [#allocation4], 0
    %s18 = scalar_lea.sflag [#allocation4], 1
    %19 = vsyncpa %s18, 0
    %20 = vsyncpa [#allocation13], 0
    %s21 = scalar_lea.sflag [#allocation13], 1
    %22 = vsyncpa %s21, 0
    loop: start=0, step=1, limit=4
    $region2: #{tpu_custom_call.1} parent=1 // loop_pre_header
      _
    $region3: #{tpu_custom_call.1} parent=1 // loop_header
      %s24 = sphi 0, %s28
      %p25 = scmp.ge.s32.totalorder %s24, 4
      %s31 = sphi 0, %s43
      %s32 = sphi 0, %s39
      %s33 = sphi 0, %s31
      %s34 = sphi 0, %s32
      %s35 = sphi 0, %s33
      %s36 = sphi 0, %s34
      %s46 = sphi 0, %s48
      %s49 = sphi 0, %s46
      %s50 = sphi 0, %s49
      %s66 = sphi 0, %s50
      %s70 = sphi 0, %s70
      %s72 = sphi 0, %s70
      %s73 = sphi 0, %s72
      %s87 = sphi 0, %s73
      %s91 = sphi 0, %s91
      %s93 = sphi 0, %s91
      %s94 = sphi 0, %s93
      %s108 = sphi 0, %s94
      %s114 = sphi 0, %s116
      %s117 = sphi 0, %s114
      %s118 = sphi 0, %s117
      %s134 = sphi 0, %s118
      %s140 = sphi 0, %s142
      %s143 = sphi 0, %s140
      %s144 = sphi 0, %s143
      %s160 = sphi 0, %s144
      %s166 = sphi 0, %s168
      %s169 = sphi 0, %s166
      %s170 = sphi 0, %s169
      %s186 = sphi 0, %s170
      %s194 = sphi 0, %s196
      %s197 = sphi 0, %s194
      %s198 = sphi 0, %s197
      %s214 = sphi 0, %s198
    $region4: #{tpu_custom_call.1} parent=1 // loop_header_branch
      %27 = sbr.rel (%p25) target = $region8
    $region5: #{tpu_custom_call.1} parent=1 // loop_body
      %s29 = ssub.s32 %s24, 1
      %s30 = ssub.s32 %s24, 2
      %s37 = sadd.s32 1, %s32
      %p38 = scmp.ge.s32.totalorder %s37, 1
      %s39 = scalar_select %p38, 0, %s37
      %s40 = sadd.s32 1, %s31
      %s41 = scalar_select %p38, %s40, %s31
      %p42 = scmp.ge.s32.totalorder %s41, 2
      %s43 = scalar_select %p42, 0, %s41
      %s44 = ssub.s32 %s31, %s43
      %p45 = scmp.eq.s32.totalorder %s44, 0
      %s47 = sadd.s32 %s46, 1
      %s48 = scalar_select %p45, %s46, %s47
      %p51 = pneg %p45
      %p52 = scmp.eq.s32.totalorder %s24, 1
      %p53 = por %p51, %p52
      %p54 = scmp.ne.s32.totalorder %s46, %s49
      %p55 = scmp.eq.s32.totalorder %s24, 0
      %p56 = por %p54, %p55
      %p57 = scmp.ne.s32.totalorder %s46, %s49
      %p58 = scmp.eq.s32.totalorder %s29, 1
      %p59 = por %p57, %p58
      %p60 = scmp.ne.s32.totalorder %s49, %s50
      %p61 = scmp.eq.s32.totalorder %s29, 0
      %p62 = por %p60, %p61
      %p63 = scmp.ne.s32.totalorder %s49, %s50
      %p64 = scmp.eq.s32.totalorder %s30, 1
      %p65 = por %p63, %p64
      %p67 = scmp.ne.s32.totalorder %s50, %s66
      %p68 = scmp.eq.s32.totalorder %s30, 0
      %p69 = por %p67, %p68
      %s71 = sadd.s32 %s70, 1
      %p74 = scmp.eq.s32.totalorder %s24, 1
      %p75 = scmp.ne.s32.totalorder %s70, %s72
      %p76 = scmp.eq.s32.totalorder %s24, 0
      %p77 = por %p75, %p76
      %p78 = scmp.ne.s32.totalorder %s70, %s72
      %p79 = scmp.eq.s32.totalorder %s29, 1
      %p80 = por %p78, %p79
      %p81 = scmp.ne.s32.totalorder %s72, %s73
      %p82 = scmp.eq.s32.totalorder %s29, 0
      %p83 = por %p81, %p82
      %p84 = scmp.ne.s32.totalorder %s72, %s73
      %p85 = scmp.eq.s32.totalorder %s30, 1
      %p86 = por %p84, %p85
      %p88 = scmp.ne.s32.totalorder %s73, %s87
      %p89 = scmp.eq.s32.totalorder %s30, 0
      %p90 = por %p88, %p89
      %s92 = sadd.s32 %s91, 1
      %p95 = scmp.eq.s32.totalorder %s24, 1
      %p96 = scmp.ne.s32.totalorder %s91, %s93
      %p97 = scmp.eq.s32.totalorder %s24, 0
      %p98 = por %p96, %p97
      %p99 = scmp.ne.s32.totalorder %s91, %s93
      %p100 = scmp.eq.s32.totalorder %s29, 1
      %p101 = por %p99, %p100
      %p102 = scmp.ne.s32.totalorder %s93, %s94
      %p103 = scmp.eq.s32.totalorder %s29, 0
      %p104 = por %p102, %p103
      %p105 = scmp.ne.s32.totalorder %s93, %s94
      %p106 = scmp.eq.s32.totalorder %s30, 1
      %p107 = por %p105, %p106
      %p109 = scmp.ne.s32.totalorder %s94, %s108
      %p110 = scmp.eq.s32.totalorder %s30, 0
      %p111 = por %p109, %p110
      %s112 = ssub.s32 %s32, %s39
      %p113 = scmp.eq.s32.totalorder %s112, 0
      %s115 = sadd.s32 %s114, 1
      %s116 = scalar_select %p113, %s114, %s115
      %p119 = pneg %p113
      %p120 = scmp.eq.s32.totalorder %s24, 1
      %p121 = por %p119, %p120
      %p122 = scmp.ne.s32.totalorder %s114, %s117
      %p123 = scmp.eq.s32.totalorder %s24, 0
      %p124 = por %p122, %p123
      %p125 = scmp.ne.s32.totalorder %s114, %s117
      %p126 = scmp.eq.s32.totalorder %s29, 1
      %p127 = por %p125, %p126
      %p128 = scmp.ne.s32.totalorder %s117, %s118
      %p129 = scmp.eq.s32.totalorder %s29, 0
      %p130 = por %p128, %p129
      %p131 = scmp.ne.s32.totalorder %s117, %s118
      %p132 = scmp.eq.s32.totalorder %s30, 1
      %p133 = por %p131, %p132
      %p135 = scmp.ne.s32.totalorder %s118, %s134
      %p136 = scmp.eq.s32.totalorder %s30, 0
      %p137 = por %p135, %p136
      %s138 = ssub.s32 %s32, %s39
      %p139 = scmp.eq.s32.totalorder %s138, 0
      %s141 = sadd.s32 %s140, 1
      %s142 = scalar_select %p139, %s140, %s141
      %p145 = pneg %p139
      %p146 = scmp.eq.s32.totalorder %s24, 1
      %p147 = por %p145, %p146
      %p148 = scmp.ne.s32.totalorder %s140, %s143
      %p149 = scmp.eq.s32.totalorder %s24, 0
      %p150 = por %p148, %p149
      %p151 = scmp.ne.s32.totalorder %s140, %s143
      %p152 = scmp.eq.s32.totalorder %s29, 1
      %p153 = por %p151, %p152
      %p154 = scmp.ne.s32.totalorder %s143, %s144
      %p155 = scmp.eq.s32.totalorder %s29, 0
      %p156 = por %p154, %p155
      %p157 = scmp.ne.s32.totalorder %s143, %s144
      %p158 = scmp.eq.s32.totalorder %s30, 1
      %p159 = por %p157, %p158
      %p161 = scmp.ne.s32.totalorder %s144, %s160
      %p162 = scmp.eq.s32.totalorder %s30, 0
      %p163 = por %p161, %p162
      %s164 = ssub.s32 %s31, %s43
      %p165 = scmp.eq.s32.totalorder %s164, 0
      %s167 = sadd.s32 %s166, 1
      %s168 = scalar_select %p165, %s166, %s167
      %p171 = pneg %p165
      %p172 = scmp.eq.s32.totalorder %s24, 1
      %p173 = por %p171, %p172
      %p174 = scmp.ne.s32.totalorder %s166, %s169
      %p175 = scmp.eq.s32.totalorder %s24, 0
      %p176 = por %p174, %p175
      %p177 = scmp.ne.s32.totalorder %s166, %s169
      %p178 = scmp.eq.s32.totalorder %s29, 1
      %p179 = por %p177, %p178
      %p180 = scmp.ne.s32.totalorder %s169, %s170
      %p181 = scmp.eq.s32.totalorder %s29, 0
      %p182 = por %p180, %p181
      %p183 = scmp.ne.s32.totalorder %s169, %s170
      %p184 = scmp.eq.s32.totalorder %s30, 1
      %p185 = por %p183, %p184
      %p187 = scmp.ne.s32.totalorder %s170, %s186
      %p188 = scmp.eq.s32.totalorder %s30, 0
      %p189 = por %p187, %p188
      %s190 = ssub.s32 %s31, %s43
      %s191 = ssub.s32 %s32, %s39
      %s192 = sor.u32 %s190, %s191
      %p193 = scmp.eq.s32.totalorder %s192, 0
      %s195 = sadd.s32 %s194, 1
      %s196 = scalar_select %p193, %s194, %s195
      %p199 = pneg %p193
      %p200 = scmp.eq.s32.totalorder %s24, 1
      %p201 = por %p199, %p200
      %p202 = scmp.ne.s32.totalorder %s194, %s197
      %p203 = scmp.eq.s32.totalorder %s24, 0
      %p204 = por %p202, %p203
      %p205 = scmp.ne.s32.totalorder %s194, %s197
      %p206 = scmp.eq.s32.totalorder %s29, 1
      %p207 = por %p205, %p206
      %p208 = scmp.ne.s32.totalorder %s197, %s198
      %p209 = scmp.eq.s32.totalorder %s29, 0
      %p210 = por %p208, %p209
      %p211 = scmp.ne.s32.totalorder %s197, %s198
      %p212 = scmp.eq.s32.totalorder %s30, 1
      %p213 = por %p211, %p212
      %p215 = scmp.ne.s32.totalorder %s198, %s214
      %p216 = scmp.eq.s32.totalorder %s30, 0
      %p217 = por %p215, %p216
      %p218 = scmp.le.s32.totalorder 1, %s24
      %p219 = scmp.lt.s32.totalorder %s24, 3
      %p220 = pnand %p218, %p219
      %p221 = pneg %p220
      // Predicated region
      $region9: #{tpu_custom_call.1} parent=5 // pred_check
        _
      $region10: #{tpu_custom_call.1} parent=5 // pred_check_branch
        %223 = sbr.rel (%p220) target = $region12
      $region11: #{tpu_custom_call.1} parent=5 // pred_region
        %s224 = ssub.s32 %s24, 1
        // Predicated region
        $region13: #{tpu_custom_call.1} parent=11 // pred_check
          %p225 = pneg %p83
        $region14: #{tpu_custom_call.1} parent=11 // pred_check_branch
          %227 = sbr.rel (%p225) target = $region16
        $region15: #{tpu_custom_call.1} parent=11 // pred_region
          %s229 = ssub.s32 32, 32
          %230 = vsyncadd [#allocation6], %s229
          %s232 = sshll.u32 [#allocation5], 4
          %s233 = int_to_ptr.vmem [resolvable:$true] %s232
          %235 = dma.hbm_to_vmem [thread:$0]  %s1, 32, %s233, [#allocation6]
        $region16: #{tpu_custom_call.1} parent=11 // pred_fallthru
          _
        // Predicated region
        $region17: #{tpu_custom_call.1} parent=11 // pred_check
          %p236 = pneg %p104
        $region18: #{tpu_custom_call.1} parent=11 // pred_check_branch
          %238 = sbr.rel (%p236) target = $region20
        $region19: #{tpu_custom_call.1} parent=11 // pred_region
          %s240 = ssub.s32 32, 32
          %241 = vsyncadd [#allocation6], %s240
          %s243 = sshll.u32 [#allocation7], 4
          %s244 = int_to_ptr.vmem [resolvable:$true] %s243
          %246 = dma.hbm_to_vmem [thread:$0]  %s2, 32, %s244, [#allocation6]
        $region20: #{tpu_custom_call.1} parent=11 // pred_fallthru
          _
        // Predicated region
        $region21: #{tpu_custom_call.1} parent=11 // pred_check
          %p247 = pneg %p130
        $region22: #{tpu_custom_call.1} parent=11 // pred_check_branch
          %249 = sbr.rel (%p247) target = $region24
        $region23: #{tpu_custom_call.1} parent=11 // pred_region
          %s250 = smul.u32 6, %s34
          %s252 = ssub.s32 12288, 12288
          %253 = vsyncadd [#allocation9], %s252
          %s254 = smul.addr %s250, 64
          %s255 = scalar_lea.hbm %s3, %s254
          %s256 = sshll.u32 [#allocation8], 4
          %s257 = int_to_ptr.vmem [resolvable:$true] %s256
          %262 = dma.hbm_to_vmem [thread:$0]  %s255, 12288, %s257, [#allocation9], 384, 384, 24
        $region24: #{tpu_custom_call.1} parent=11 // pred_fallthru
          _
        // Predicated region
        $region25: #{tpu_custom_call.1} parent=11 // pred_check
          %p263 = pneg %p156
        $region26: #{tpu_custom_call.1} parent=11 // pred_check_branch
          %265 = sbr.rel (%p263) target = $region28
        $region27: #{tpu_custom_call.1} parent=11 // pred_region
          %s266 = smul.u32 6, %s34
          %s268 = ssub.s32 96, 96
          %269 = vsyncadd [#allocation9], %s268
          %s270 = smul.addr %s266, 16
          %s271 = scalar_lea.hbm %s4, %s270
          %s273 = sshll.u32 [#allocation10], 4
          %s274 = int_to_ptr.vmem [resolvable:$true] %s273
          %276 = dma.hbm_to_vmem [thread:$0]  %s271, 96, %s274, [#allocation9]
        $region28: #{tpu_custom_call.1} parent=11 // pred_fallthru
          _
      $region12: #{tpu_custom_call.1} parent=5 // pred_fallthru
        _
      %p277 = scmp.lt.s32.totalorder %s24, 2
      // Predicated region
      $region29: #{tpu_custom_call.1} parent=5 // pred_check
        %p278 = pneg %p277
      $region30: #{tpu_custom_call.1} parent=5 // pred_check_branch
        %280 = sbr.rel (%p278) target = $region32
      $region31: #{tpu_custom_call.1} parent=5 // pred_region
        // Predicated region
        $region33: #{tpu_custom_call.1} parent=31 // pred_check
          %p281 = pneg %p56
        $region34: #{tpu_custom_call.1} parent=31 // pred_check_branch
          %283 = sbr.rel (%p281) target = $region36
        $region35: #{tpu_custom_call.1} parent=31 // pred_region
          %s284 = sand.u32 %s46, 1
          %s285 = scalar_lea.sflag [#allocation3], %s284
          %s286 = sand.u32 %s46, 1
          %s287 = smul.addr %s286, 256
          %s288 = scalar_lea.vmem [#allocation2], %s287
          %s289 = smul.u32 16, %s31
          %s291 = ssub.s32 4096, 4096
          %292 = vsyncadd %s285, %s291
          %s293 = smul.addr %s289, 2
          %s294 = smul.addr %s293, 128
          %s295 = scalar_lea.hbm %s0, %s294
          %s296 = sshll.u32 %s288, 4
          %s297 = int_to_ptr.vmem [resolvable:$true] %s296
          %302 = dma.hbm_to_vmem [thread:$0]  %s295, 4096, %s297, %s285, 256, 256, 16
        $region36: #{tpu_custom_call.1} parent=31 // pred_fallthru
          _
      $region32: #{tpu_custom_call.1} parent=5 // pred_fallthru
        _
      %p303 = scmp.le.s32.totalorder 1, %s24
      %p304 = scmp.lt.s32.totalorder %s24, 3
      %p305 = pnand %p303, %p304
      %p306 = pneg %p305
      // Predicated region
      $region37: #{tpu_custom_call.1} parent=5 // pred_check
        _
      $region38: #{tpu_custom_call.1} parent=5 // pred_check_branch
        %308 = sbr.rel (%p305) target = $region40
      $region39: #{tpu_custom_call.1} parent=5 // pred_region
        %s309 = ssub.s32 %s24, 1
        %s310 = sand.u32 %s49, 1
        %s311 = scalar_lea.sflag [#allocation3], %s310
        %s312 = sand.u32 %s49, 1
        %s313 = smul.addr %s312, 256
        %s314 = scalar_lea.vmem [#allocation2], %s313
        // Predicated region
        $region41: #{tpu_custom_call.1} parent=39 // pred_check
          %p315 = pneg %p62
        $region42: #{tpu_custom_call.1} parent=39 // pred_check_branch
          %317 = sbr.rel (%p315) target = $region44
        $region43: #{tpu_custom_call.1} parent=39 // pred_region
          %318 = dma.done %s311, 4096
        $region44: #{tpu_custom_call.1} parent=39 // pred_fallthru
          _
        // Predicated region
        $region45: #{tpu_custom_call.1} parent=39 // pred_check
          %p319 = pneg %p83
        $region46: #{tpu_custom_call.1} parent=39 // pred_check_branch
          %321 = sbr.rel (%p319) target = $region48
        $region47: #{tpu_custom_call.1} parent=39 // pred_region
          %322 = dma.done [#allocation6], 32
        $region48: #{tpu_custom_call.1} parent=39 // pred_fallthru
          _
        // Predicated region
        $region49: #{tpu_custom_call.1} parent=39 // pred_check
          %p323 = pneg %p104
        $region50: #{tpu_custom_call.1} parent=39 // pred_check_branch
          %325 = sbr.rel (%p323) target = $region52
        $region51: #{tpu_custom_call.1} parent=39 // pred_region
          %326 = dma.done [#allocation6], 32
        $region52: #{tpu_custom_call.1} parent=39 // pred_fallthru
          _
        // Predicated region
        $region53: #{tpu_custom_call.1} parent=39 // pred_check
          %p327 = pneg %p130
        $region54: #{tpu_custom_call.1} parent=39 // pred_check_branch
          %329 = sbr.rel (%p327) target = $region56
        $region55: #{tpu_custom_call.1} parent=39 // pred_region
          %330 = dma.done [#allocation9], 12288
        $region56: #{tpu_custom_call.1} parent=39 // pred_fallthru
          _
        // Predicated region
        $region57: #{tpu_custom_call.1} parent=39 // pred_check
          %p331 = pneg %p156
        $region58: #{tpu_custom_call.1} parent=39 // pred_check_branch
          %333 = sbr.rel (%p331) target = $region60
        $region59: #{tpu_custom_call.1} parent=39 // pred_region
          %334 = dma.done [#allocation9], 96
        $region60: #{tpu_custom_call.1} parent=39 // pred_fallthru
          _
        %s335 = sand.u32 %s49, 1
        %s336 = scalar_lea.sflag [#allocation3], %s335
        %s337 = sand.u32 %s49, 1
        %s338 = smul.addr %s337, 256
        %s339 = scalar_lea.vmem [#allocation2], %s338
        %p340 = pneg %p62
        %p341 = pneg %p59
        %p342 = pneg %p83
        %p343 = pneg %p80
        %p344 = pneg %p104
        %p345 = pneg %p101
        %p346 = pneg %p130
        %p347 = pneg %p127
        %p348 = pneg %p156
        %p349 = pneg %p153
        %p350 = pneg %p182
        %p351 = pneg %p179
        %s352 = sand.u32 %s169, 1
        %s353 = scalar_lea.sflag [#allocation4], %s352
        %s354 = sand.u32 %s169, 1
        %s355 = smul.addr %s354, 256
        %s356 = scalar_lea.vmem [#allocation11], %s355
        %p357 = pneg %p210
        %p358 = pneg %p207
        %s359 = sand.u32 %s197, 1
        %s360 = scalar_lea.sflag [#allocation13], %s359
        %s361 = sand.u32 %s197, 1
        %s362 = smul.addr %s361, 384
        %s363 = scalar_lea.vmem [#allocation12], %s362
        %s364 = smul.u32 16, %s33
        %s365 = smul.u32 6, %s34
        %s366 = smul.u32 6, %s34
        %s367 = smul.u32 16, %s33
        %s368 = smul.u32 16, %s33
        %s369 = smul.u32 6, %s34
        %v370 = vld [vmem:[%s314] sm:$0xff]
        %v371 = vld [vmem:[%s314 + $0x8] sm:$0xff]
        %v372 = vld [vmem:[%s314 + $0x10] sm:$0xff]
        %v373 = vld [vmem:[%s314 + $0x18] sm:$0xff]
        %v374 = vld [vmem:[%s314 + $0x20] sm:$0xff]
        %v375 = vld [vmem:[%s314 + $0x28] sm:$0xff]
        %v376 = vld [vmem:[%s314 + $0x30] sm:$0xff]
        %v377 = vld [vmem:[%s314 + $0x38] sm:$0xff]
        %v378 = vld [vmem:[%s314 + $0x40] sm:$0xff]
        %v379 = vld [vmem:[%s314 + $0x48] sm:$0xff]
        %v380 = vld [vmem:[%s314 + $0x50] sm:$0xff]
        %v381 = vld [vmem:[%s314 + $0x58] sm:$0xff]
        %v382 = vld [vmem:[%s314 + $0x60] sm:$0xff]
        %v383 = vld [vmem:[%s314 + $0x68] sm:$0xff]
        %v384 = vld [vmem:[%s314 + $0x70] sm:$0xff]
        %v385 = vld [vmem:[%s314 + $0x78] sm:$0xff]
        %v386 = vld [vmem:[%s314 + $0x80] sm:$0xff]
        %v387 = vld [vmem:[%s314 + $0x88] sm:$0xff]
        %v388 = vld [vmem:[%s314 + $0x90] sm:$0xff]
        %v389 = vld [vmem:[%s314 + $0x98] sm:$0xff]
        %v390 = vld [vmem:[%s314 + $0xa0] sm:$0xff]
        %v391 = vld [vmem:[%s314 + $0xa8] sm:$0xff]
        %v392 = vld [vmem:[%s314 + $0xb0] sm:$0xff]
        %v393 = vld [vmem:[%s314 + $0xb8] sm:$0xff]
        %v394 = vld [vmem:[%s314 + $0xc0] sm:$0xff]
        %v395 = vld [vmem:[%s314 + $0xc8] sm:$0xff]
        %v396 = vld [vmem:[%s314 + $0xd0] sm:$0xff]
        %v397 = vld [vmem:[%s314 + $0xd8] sm:$0xff]
        %v398 = vld [vmem:[%s314 + $0xe0] sm:$0xff]
        %v399 = vld [vmem:[%s314 + $0xe8] sm:$0xff]
        %v400 = vld [vmem:[%s314 + $0xf0] sm:$0xff]
        %v401 = vld [vmem:[%s314 + $0xf8] sm:$0xff]
        %v402 = vadd.f32 %v370, %v371
        %403 = vadd.xlane.f32.xlu0 %v402
        %v404 = vpop.xlane.xlu0 %403
        %v405 = vadd.f32 %v372, %v373
        %406 = vadd.xlane.f32.xlu0 %v405
        %v407 = vpop.xlane.xlu0 %406
        %v408 = vadd.f32 %v374, %v375
        %409 = vadd.xlane.f32.xlu0 %v408
        %v410 = vpop.xlane.xlu0 %409
        %v411 = vadd.f32 %v376, %v377
        %412 = vadd.xlane.f32.xlu0 %v411
        %v413 = vpop.xlane.xlu0 %412
        %v414 = vadd.f32 %v378, %v379
        %415 = vadd.xlane.f32.xlu0 %v414
        %v416 = vpop.xlane.xlu0 %415
        %v417 = vadd.f32 %v380, %v381
        %418 = vadd.xlane.f32.xlu0 %v417
        %v419 = vpop.xlane.xlu0 %418
        %v420 = vadd.f32 %v382, %v383
        %421 = vadd.xlane.f32.xlu0 %v420
        %v422 = vpop.xlane.xlu0 %421
        %v423 = vadd.f32 %v384, %v385
        %424 = vadd.xlane.f32.xlu0 %v423
        %v425 = vpop.xlane.xlu0 %424
        %v426 = vadd.f32 %v386, %v387
        %427 = vadd.xlane.f32.xlu0 %v426
        %v428 = vpop.xlane.xlu0 %427
        %v429 = vadd.f32 %v388, %v389
        %430 = vadd.xlane.f32.xlu0 %v429
        %v431 = vpop.xlane.xlu0 %430
        %v432 = vadd.f32 %v390, %v391
        %433 = vadd.xlane.f32.xlu0 %v432
        %v434 = vpop.xlane.xlu0 %433
        %v435 = vadd.f32 %v392, %v393
        %436 = vadd.xlane.f32.xlu0 %v435
        %v437 = vpop.xlane.xlu0 %436
        %v438 = vadd.f32 %v394, %v395
        %439 = vadd.xlane.f32.xlu0 %v438
        %v440 = vpop.xlane.xlu0 %439
        %v441 = vadd.f32 %v396, %v397
        %442 = vadd.xlane.f32.xlu0 %v441
        %v443 = vpop.xlane.xlu0 %442
        %v444 = vadd.f32 %v398, %v399
        %445 = vadd.xlane.f32.xlu0 %v444
        %v446 = vpop.xlane.xlu0 %445
        %v447 = vadd.f32 %v400, %v401
        %448 = vadd.xlane.f32.xlu0 %v447
        %v449 = vpop.xlane.xlu0 %448
        %v450 = vrcp.pop 256.0
        %v451 = vmul.f32 %v404, %v450
        %v452 = vmul.f32 %v407, %v450
        %v453 = vmul.f32 %v410, %v450
        %v454 = vmul.f32 %v413, %v450
        %v455 = vmul.f32 %v416, %v450
        %v456 = vmul.f32 %v419, %v450
        %v457 = vmul.f32 %v422, %v450
        %v458 = vmul.f32 %v425, %v450
        %v459 = vmul.f32 %v428, %v450
        %v460 = vmul.f32 %v431, %v450
        %v461 = vmul.f32 %v434, %v450
        %v462 = vmul.f32 %v437, %v450
        %v463 = vmul.f32 %v440, %v450
        %v464 = vmul.f32 %v443, %v450
        %v465 = vmul.f32 %v446, %v450
        %v466 = vmul.f32 %v449, %v450
        %v467 = vsub.f32 %v370, %v451
        %v468 = vsub.f32 %v371, %v451
        %v469 = vsub.f32 %v372, %v452
        %v470 = vsub.f32 %v373, %v452
        %v471 = vsub.f32 %v374, %v453
        %v472 = vsub.f32 %v375, %v453
        %v473 = vsub.f32 %v376, %v454
        %v474 = vsub.f32 %v377, %v454
        %v475 = vsub.f32 %v378, %v455
        %v476 = vsub.f32 %v379, %v455
        %v477 = vsub.f32 %v380, %v456
        %v478 = vsub.f32 %v381, %v456
        %v479 = vsub.f32 %v382, %v457
        %v480 = vsub.f32 %v383, %v457
        %v481 = vsub.f32 %v384, %v458
        %v482 = vsub.f32 %v385, %v458
        %v483 = vsub.f32 %v386, %v459
        %v484 = vsub.f32 %v387, %v459
        %v485 = vsub.f32 %v388, %v460
        %v486 = vsub.f32 %v389, %v460
        %v487 = vsub.f32 %v390, %v461
        %v488 = vsub.f32 %v391, %v461
        %v489 = vsub.f32 %v392, %v462
        %v490 = vsub.f32 %v393, %v462
        %v491 = vsub.f32 %v394, %v463
        %v492 = vsub.f32 %v395, %v463
        %v493 = vsub.f32 %v396, %v464
        %v494 = vsub.f32 %v397, %v464
        %v495 = vsub.f32 %v398, %v465
        %v496 = vsub.f32 %v399, %v465
        %v497 = vsub.f32 %v400, %v466
        %v498 = vsub.f32 %v401, %v466
        %v499 = vmul.f32 %v467, %v467
        %v500 = vmul.f32 %v468, %v468
        %v501 = vmul.f32 %v469, %v469
        %v502 = vmul.f32 %v470, %v470
        %v503 = vmul.f32 %v471, %v471
        %v504 = vmul.f32 %v472, %v472
        %v505 = vmul.f32 %v473, %v473
        %v506 = vmul.f32 %v474, %v474
        %v507 = vmul.f32 %v475, %v475
        %v508 = vmul.f32 %v476, %v476
        %v509 = vmul.f32 %v477, %v477
        %v510 = vmul.f32 %v478, %v478
        %v511 = vmul.f32 %v479, %v479
        %v512 = vmul.f32 %v480, %v480
        %v513 = vmul.f32 %v481, %v481
        %v514 = vmul.f32 %v482, %v482
        %v515 = vmul.f32 %v483, %v483
        %v516 = vmul.f32 %v484, %v484
        %v517 = vmul.f32 %v485, %v485
        %v518 = vmul.f32 %v486, %v486
        %v519 = vmul.f32 %v487, %v487
        %v520 = vmul.f32 %v488, %v488
        %v521 = vmul.f32 %v489, %v489
        %v522 = vmul.f32 %v490, %v490
        %v523 = vmul.f32 %v491, %v491
        %v524 = vmul.f32 %v492, %v492
        %v525 = vmul.f32 %v493, %v493
        %v526 = vmul.f32 %v494, %v494
        %v527 = vmul.f32 %v495, %v495
        %v528 = vmul.f32 %v496, %v496
        %v529 = vmul.f32 %v497, %v497
        %v530 = vmul.f32 %v498, %v498
        %v531 = vadd.f32 %v499, %v500
        %532 = vadd.xlane.f32.xlu0 %v531
        %v533 = vpop.xlane.xlu0 %532
        %v534 = vadd.f32 %v501, %v502
        %535 = vadd.xlane.f32.xlu0 %v534
        %v536 = vpop.xlane.xlu0 %535
        %v537 = vadd.f32 %v503, %v504
        %538 = vadd.xlane.f32.xlu0 %v537
        %v539 = vpop.xlane.xlu0 %538
        %v540 = vadd.f32 %v505, %v506
        %541 = vadd.xlane.f32.xlu0 %v540
        %v542 = vpop.xlane.xlu0 %541
        %v543 = vadd.f32 %v507, %v508
        %544 = vadd.xlane.f32.xlu0 %v543
        %v545 = vpop.xlane.xlu0 %544
        %v546 = vadd.f32 %v509, %v510
        %547 = vadd.xlane.f32.xlu0 %v546
        %v548 = vpop.xlane.xlu0 %547
        %v549 = vadd.f32 %v511, %v512
        %550 = vadd.xlane.f32.xlu0 %v549
        %v551 = vpop.xlane.xlu0 %550
        %v552 = vadd.f32 %v513, %v514
        %553 = vadd.xlane.f32.xlu0 %v552
        %v554 = vpop.xlane.xlu0 %553
        %v555 = vadd.f32 %v515, %v516
        %556 = vadd.xlane.f32.xlu0 %v555
        %v557 = vpop.xlane.xlu0 %556
        %v558 = vadd.f32 %v517, %v518
        %559 = vadd.xlane.f32.xlu0 %v558
        %v560 = vpop.xlane.xlu0 %559
        %v561 = vadd.f32 %v519, %v520
        %562 = vadd.xlane.f32.xlu0 %v561
        %v563 = vpop.xlane.xlu0 %562
        %v564 = vadd.f32 %v521, %v522
        %565 = vadd.xlane.f32.xlu0 %v564
        %v566 = vpop.xlane.xlu0 %565
        %v567 = vadd.f32 %v523, %v524
        %568 = vadd.xlane.f32.xlu0 %v567
        %v569 = vpop.xlane.xlu0 %568
        %v570 = vadd.f32 %v525, %v526
        %571 = vadd.xlane.f32.xlu0 %v570
        %v572 = vpop.xlane.xlu0 %571
        %v573 = vadd.f32 %v527, %v528
        %574 = vadd.xlane.f32.xlu0 %v573
        %v575 = vpop.xlane.xlu0 %574
        %v576 = vadd.f32 %v529, %v530
        %577 = vadd.xlane.f32.xlu0 %v576
        %v578 = vpop.xlane.xlu0 %577
        %v579 = vmul.f32 %v533, %v450
        %v580 = vmul.f32 %v536, %v450
        %v581 = vmul.f32 %v539, %v450
        %v582 = vmul.f32 %v542, %v450
        %v583 = vmul.f32 %v545, %v450
        %v584 = vmul.f32 %v548, %v450
        %v585 = vmul.f32 %v551, %v450
        %v586 = vmul.f32 %v554, %v450
        %v587 = vmul.f32 %v557, %v450
        %v588 = vmul.f32 %v560, %v450
        %v589 = vmul.f32 %v563, %v450
        %v590 = vmul.f32 %v566, %v450
        %v591 = vmul.f32 %v569, %v450
        %v592 = vmul.f32 %v572, %v450
        %v593 = vmul.f32 %v575, %v450
        %v594 = vmul.f32 %v578, %v450
        %v595 = vadd.f32 %v579, 1e-05
        %v596 = vadd.f32 %v580, 1e-05
        %v597 = vadd.f32 %v581, 1e-05
        %v598 = vadd.f32 %v582, 1e-05
        %v599 = vadd.f32 %v583, 1e-05
        %v600 = vadd.f32 %v584, 1e-05
        %v601 = vadd.f32 %v585, 1e-05
        %v602 = vadd.f32 %v586, 1e-05
        %v603 = vadd.f32 %v587, 1e-05
        %v604 = vadd.f32 %v588, 1e-05
        %v605 = vadd.f32 %v589, 1e-05
        %v606 = vadd.f32 %v590, 1e-05
        %v607 = vadd.f32 %v591, 1e-05
        %v608 = vadd.f32 %v592, 1e-05
        %v609 = vadd.f32 %v593, 1e-05
        %v610 = vadd.f32 %v594, 1e-05
        %v611 = vrsqrt.pop %v595
        %v612 = vrsqrt.pop %v596
        %v613 = vrsqrt.pop %v597
        %v614 = vrsqrt.pop %v598
        %v615 = vrsqrt.pop %v599
        %v616 = vrsqrt.pop %v600
        %v617 = vrsqrt.pop %v601
        %v618 = vrsqrt.pop %v602
        %v619 = vrsqrt.pop %v603
        %v620 = vrsqrt.pop %v604
        %v621 = vrsqrt.pop %v605
        %v622 = vrsqrt.pop %v606
        %v623 = vrsqrt.pop %v607
        %v624 = vrsqrt.pop %v608
        %v625 = vrsqrt.pop %v609
        %v626 = vrsqrt.pop %v610
        %v627 = vmul.f32 %v467, %v611
        %v628 = vmul.f32 %v468, %v611
        %v629 = vmul.f32 %v469, %v612
        %v630 = vmul.f32 %v470, %v612
        %v631 = vmul.f32 %v471, %v613
        %v632 = vmul.f32 %v472, %v613
        %v633 = vmul.f32 %v473, %v614
        %v634 = vmul.f32 %v474, %v614
        %v635 = vmul.f32 %v475, %v615
        %v636 = vmul.f32 %v476, %v615
        %v637 = vmul.f32 %v477, %v616
        %v638 = vmul.f32 %v478, %v616
        %v639 = vmul.f32 %v479, %v617
        %v640 = vmul.f32 %v480, %v617
        %v641 = vmul.f32 %v481, %v618
        %v642 = vmul.f32 %v482, %v618
        %v643 = vmul.f32 %v483, %v619
        %v644 = vmul.f32 %v484, %v619
        %v645 = vmul.f32 %v485, %v620
        %v646 = vmul.f32 %v486, %v620
        %v647 = vmul.f32 %v487, %v621
        %v648 = vmul.f32 %v488, %v621
        %v649 = vmul.f32 %v489, %v622
        %v650 = vmul.f32 %v490, %v622
        %v651 = vmul.f32 %v491, %v623
        %v652 = vmul.f32 %v492, %v623
        %v653 = vmul.f32 %v493, %v624
        %v654 = vmul.f32 %v494, %v624
        %v655 = vmul.f32 %v495, %v625
        %v656 = vmul.f32 %v496, %v625
        %v657 = vmul.f32 %v497, %v626
        %v658 = vmul.f32 %v498, %v626
        %v659 = vld [vmem:[#allocation5] sm:$0x3]
        %v661 = vlaneseq
        %v662 = vshrl.u32 %v661, 7
        %v663 = vsub.s32 0, %v662
        %v664 = vrot.slane %v659, %v663
        %v665 = vlaneseq
        %v666 = vshrl.u32 %v665, 7
        %v667 = vsub.s32 1, %v666
        %v668 = vrot.slane %v659, %v667
        %v671 = vmul.f32 %v627, %v664
        %v672 = vmul.f32 %v628, %v668
        %v673 = vmul.f32 %v629, %v664
        %v674 = vmul.f32 %v630, %v668
        %v675 = vmul.f32 %v631, %v664
        %v676 = vmul.f32 %v632, %v668
        %v677 = vmul.f32 %v633, %v664
        %v678 = vmul.f32 %v634, %v668
        %v679 = vmul.f32 %v635, %v664
        %v680 = vmul.f32 %v636, %v668
        %v681 = vmul.f32 %v637, %v664
        %v682 = vmul.f32 %v638, %v668
        %v683 = vmul.f32 %v639, %v664
        %v684 = vmul.f32 %v640, %v668
        %v685 = vmul.f32 %v641, %v664
        %v686 = vmul.f32 %v642, %v668
        %v687 = vmul.f32 %v643, %v664
        %v688 = vmul.f32 %v644, %v668
        %v689 = vmul.f32 %v645, %v664
        %v690 = vmul.f32 %v646, %v668
        %v691 = vmul.f32 %v647, %v664
        %v692 = vmul.f32 %v648, %v668
        %v693 = vmul.f32 %v649, %v664
        %v694 = vmul.f32 %v650, %v668
        %v695 = vmul.f32 %v651, %v664
        %v696 = vmul.f32 %v652, %v668
        %v697 = vmul.f32 %v653, %v664
        %v698 = vmul.f32 %v654, %v668
        %v699 = vmul.f32 %v655, %v664
        %v700 = vmul.f32 %v656, %v668
        %v701 = vmul.f32 %v657, %v664
        %v702 = vmul.f32 %v658, %v668
        %v703 = vld [vmem:[#allocation7] sm:$0x3]
        %v705 = vlaneseq
        %v706 = vshrl.u32 %v705, 7
        %v707 = vsub.s32 0, %v706
        %v708 = vrot.slane %v703, %v707
        %v709 = vlaneseq
        %v710 = vshrl.u32 %v709, 7
        %v711 = vsub.s32 1, %v710
        %v712 = vrot.slane %v703, %v711
        %v715 = vadd.f32 %v671, %v708
        %v716 = vadd.f32 %v672, %v712
        %v717 = vadd.f32 %v673, %v708
        %v718 = vadd.f32 %v674, %v712
        %v719 = vadd.f32 %v675, %v708
        %v720 = vadd.f32 %v676, %v712
        %v721 = vadd.f32 %v677, %v708
        %v722 = vadd.f32 %v678, %v712
        %v723 = vadd.f32 %v679, %v708
        %v724 = vadd.f32 %v680, %v712
        %v725 = vadd.f32 %v681, %v708
        %v726 = vadd.f32 %v682, %v712
        %v727 = vadd.f32 %v683, %v708
        %v728 = vadd.f32 %v684, %v712
        %v729 = vadd.f32 %v685, %v708
        %v730 = vadd.f32 %v686, %v712
        %v731 = vadd.f32 %v687, %v708
        %v732 = vadd.f32 %v688, %v712
        %v733 = vadd.f32 %v689, %v708
        %v734 = vadd.f32 %v690, %v712
        %v735 = vadd.f32 %v691, %v708
        %v736 = vadd.f32 %v692, %v712
        %v737 = vadd.f32 %v693, %v708
        %v738 = vadd.f32 %v694, %v712
        %v739 = vadd.f32 %v695, %v708
        %v740 = vadd.f32 %v696, %v712
        %v741 = vadd.f32 %v697, %v708
        %v742 = vadd.f32 %v698, %v712
        %v743 = vadd.f32 %v699, %v708
        %v744 = vadd.f32 %v700, %v712
        %v745 = vadd.f32 %v701, %v708
        %v746 = vadd.f32 %v702, %v712
        %747 = vst [vmem:[%s356] sm:$0xff] %v715
        %748 = vst [vmem:[%s356 + $0x8] sm:$0xff] %v716
        %749 = vst [vmem:[%s356 + $0x10] sm:$0xff] %v717
        %750 = vst [vmem:[%s356 + $0x18] sm:$0xff] %v718
        %751 = vst [vmem:[%s356 + $0x20] sm:$0xff] %v719
        %752 = vst [vmem:[%s356 + $0x28] sm:$0xff] %v720
        %753 = vst [vmem:[%s356 + $0x30] sm:$0xff] %v721
        %754 = vst [vmem:[%s356 + $0x38] sm:$0xff] %v722
        %755 = vst [vmem:[%s356 + $0x40] sm:$0xff] %v723
        %756 = vst [vmem:[%s356 + $0x48] sm:$0xff] %v724
        %757 = vst [vmem:[%s356 + $0x50] sm:$0xff] %v725
        %758 = vst [vmem:[%s356 + $0x58] sm:$0xff] %v726
        %759 = vst [vmem:[%s356 + $0x60] sm:$0xff] %v727
        %760 = vst [vmem:[%s356 + $0x68] sm:$0xff] %v728
        %761 = vst [vmem:[%s356 + $0x70] sm:$0xff] %v729
        %762 = vst [vmem:[%s356 + $0x78] sm:$0xff] %v730
        %763 = vst [vmem:[%s356 + $0x80] sm:$0xff] %v731
        %764 = vst [vmem:[%s356 + $0x88] sm:$0xff] %v732
        %765 = vst [vmem:[%s356 + $0x90] sm:$0xff] %v733
        %766 = vst [vmem:[%s356 + $0x98] sm:$0xff] %v734
        %767 = vst [vmem:[%s356 + $0xa0] sm:$0xff] %v735
        %768 = vst [vmem:[%s356 + $0xa8] sm:$0xff] %v736
        %769 = vst [vmem:[%s356 + $0xb0] sm:$0xff] %v737
        %770 = vst [vmem:[%s356 + $0xb8] sm:$0xff] %v738
        %771 = vst [vmem:[%s356 + $0xc0] sm:$0xff] %v739
        %772 = vst [vmem:[%s356 + $0xc8] sm:$0xff] %v740
        %773 = vst [vmem:[%s356 + $0xd0] sm:$0xff] %v741
        %774 = vst [vmem:[%s356 + $0xd8] sm:$0xff] %v742
        %775 = vst [vmem:[%s356 + $0xe0] sm:$0xff] %v743
        %776 = vst [vmem:[%s356 + $0xe8] sm:$0xff] %v744
        %777 = vst [vmem:[%s356 + $0xf0] sm:$0xff] %v745
        %778 = vst [vmem:[%s356 + $0xf8] sm:$0xff] %v746
        %v779 = vpack.c.bf16 %v717, %v715
        %v780 = vpack.c.bf16 %v718, %v716
        %v781 = vpack.c.bf16 %v721, %v719
        %v782 = vpack.c.bf16 %v722, %v720
        %v783 = vpack.c.bf16 %v725, %v723
        %v784 = vpack.c.bf16 %v726, %v724
        %v785 = vpack.c.bf16 %v729, %v727
        %v786 = vpack.c.bf16 %v730, %v728
        %v787 = vpack.c.bf16 %v733, %v731
        %v788 = vpack.c.bf16 %v734, %v732
        %v789 = vpack.c.bf16 %v737, %v735
        %v790 = vpack.c.bf16 %v738, %v736
        %v791 = vpack.c.bf16 %v741, %v739
        %v792 = vpack.c.bf16 %v742, %v740
        %v793 = vpack.c.bf16 %v745, %v743
        %v794 = vpack.c.bf16 %v746, %v744
        %v795 = vld [vmem:[#allocation8] sm:$0xff]
        %v796 = vld [vmem:[#allocation8 + $0x8] sm:$0xff]
        %v797 = vld [vmem:[#allocation8 + $0x10] sm:$0xff]
        %v798 = vld [vmem:[#allocation8 + $0x18] sm:$0xff]
        %v799 = vld [vmem:[#allocation8 + $0x20] sm:$0xff]
        %v800 = vld [vmem:[#allocation8 + $0x28] sm:$0xff]
        %v801 = vld [vmem:[#allocation8 + $0x30] sm:$0xff]
        %v802 = vld [vmem:[#allocation8 + $0x38] sm:$0xff]
        %v803 = vld [vmem:[#allocation8 + $0x40] sm:$0xff]
        %v804 = vld [vmem:[#allocation8 + $0x48] sm:$0xff]
        %v805 = vld [vmem:[#allocation8 + $0x50] sm:$0xff]
        %v806 = vld [vmem:[#allocation8 + $0x58] sm:$0xff]
        %v807 = vld [vmem:[#allocation8 + $0x60] sm:$0xff]
        %v808 = vld [vmem:[#allocation8 + $0x68] sm:$0xff]
        %v809 = vld [vmem:[#allocation8 + $0x70] sm:$0xff]
        %v810 = vld [vmem:[#allocation8 + $0x78] sm:$0xff]
        %v811 = vld [vmem:[#allocation8 + $0x80] sm:$0xff]
        %v812 = vld [vmem:[#allocation8 + $0x88] sm:$0xff]
        %v813 = vld [vmem:[#allocation8 + $0x90] sm:$0xff]
        %v814 = vld [vmem:[#allocation8 + $0x98] sm:$0xff]
        %v815 = vld [vmem:[#allocation8 + $0xa0] sm:$0xff]
        %v816 = vld [vmem:[#allocation8 + $0xa8] sm:$0xff]
        %v817 = vld [vmem:[#allocation8 + $0xb0] sm:$0xff]
        %v818 = vld [vmem:[#allocation8 + $0xb8] sm:$0xff]
        %v819 = vld [vmem:[#allocation8 + $0xc0] sm:$0xff]
        %v820 = vld [vmem:[#allocation8 + $0xc8] sm:$0xff]
        %v821 = vld [vmem:[#allocation8 + $0xd0] sm:$0xff]
        %v822 = vld [vmem:[#allocation8 + $0xd8] sm:$0xff]
        %v823 = vld [vmem:[#allocation8 + $0xe0] sm:$0xff]
        %v824 = vld [vmem:[#allocation8 + $0xe8] sm:$0xff]
        %v825 = vld [vmem:[#allocation8 + $0xf0] sm:$0xff]
        %v826 = vld [vmem:[#allocation8 + $0xf8] sm:$0xff]
        %v827 = vld [vmem:[#allocation8 + $0x100] sm:$0xff]
        %v828 = vld [vmem:[#allocation8 + $0x108] sm:$0xff]
        %v829 = vld [vmem:[#allocation8 + $0x110] sm:$0xff]
        %v830 = vld [vmem:[#allocation8 + $0x118] sm:$0xff]
        %v831 = vld [vmem:[#allocation8 + $0x120] sm:$0xff]
        %v832 = vld [vmem:[#allocation8 + $0x128] sm:$0xff]
        %v833 = vld [vmem:[#allocation8 + $0x130] sm:$0xff]
        %v834 = vld [vmem:[#allocation8 + $0x138] sm:$0xff]
        %v835 = vld [vmem:[#allocation8 + $0x140] sm:$0xff]
        %v836 = vld [vmem:[#allocation8 + $0x148] sm:$0xff]
        %v837 = vld [vmem:[#allocation8 + $0x150] sm:$0xff]
        %v838 = vld [vmem:[#allocation8 + $0x158] sm:$0xff]
        %v839 = vld [vmem:[#allocation8 + $0x160] sm:$0xff]
        %v840 = vld [vmem:[#allocation8 + $0x168] sm:$0xff]
        %v841 = vld [vmem:[#allocation8 + $0x170] sm:$0xff]
        %v842 = vld [vmem:[#allocation8 + $0x178] sm:$0xff]
        %v843 = vld [vmem:[#allocation8 + $0x180] sm:$0xff]
        %v844 = vld [vmem:[#allocation8 + $0x188] sm:$0xff]
        %v845 = vld [vmem:[#allocation8 + $0x190] sm:$0xff]
        %v846 = vld [vmem:[#allocation8 + $0x198] sm:$0xff]
        %v847 = vld [vmem:[#allocation8 + $0x1a0] sm:$0xff]
        %v848 = vld [vmem:[#allocation8 + $0x1a8] sm:$0xff]
        %v849 = vld [vmem:[#allocation8 + $0x1b0] sm:$0xff]
        %v850 = vld [vmem:[#allocation8 + $0x1b8] sm:$0xff]
        %v851 = vld [vmem:[#allocation8 + $0x1c0] sm:$0xff]
        %v852 = vld [vmem:[#allocation8 + $0x1c8] sm:$0xff]
        %v853 = vld [vmem:[#allocation8 + $0x1d0] sm:$0xff]
        %v854 = vld [vmem:[#allocation8 + $0x1d8] sm:$0xff]
        %v855 = vld [vmem:[#allocation8 + $0x1e0] sm:$0xff]
        %v856 = vld [vmem:[#allocation8 + $0x1e8] sm:$0xff]
        %v857 = vld [vmem:[#allocation8 + $0x1f0] sm:$0xff]
        %v858 = vld [vmem:[#allocation8 + $0x1f8] sm:$0xff]
        %v859 = vld [vmem:[#allocation8 + $0x200] sm:$0xff]
        %v860 = vld [vmem:[#allocation8 + $0x208] sm:$0xff]
        %v861 = vld [vmem:[#allocation8 + $0x210] sm:$0xff]
        %v862 = vld [vmem:[#allocation8 + $0x218] sm:$0xff]
        %v863 = vld [vmem:[#allocation8 + $0x220] sm:$0xff]
        %v864 = vld [vmem:[#allocation8 + $0x228] sm:$0xff]
        %v865 = vld [vmem:[#allocation8 + $0x230] sm:$0xff]
        %v866 = vld [vmem:[#allocation8 + $0x238] sm:$0xff]
        %v867 = vld [vmem:[#allocation8 + $0x240] sm:$0xff]
        %v868 = vld [vmem:[#allocation8 + $0x248] sm:$0xff]
        %v869 = vld [vmem:[#allocation8 + $0x250] sm:$0xff]
        %v870 = vld [vmem:[#allocation8 + $0x258] sm:$0xff]
        %v871 = vld [vmem:[#allocation8 + $0x260] sm:$0xff]
        %v872 = vld [vmem:[#allocation8 + $0x268] sm:$0xff]
        %v873 = vld [vmem:[#allocation8 + $0x270] sm:$0xff]
        %v874 = vld [vmem:[#allocation8 + $0x278] sm:$0xff]
        %v875 = vld [vmem:[#allocation8 + $0x280] sm:$0xff]
        %v876 = vld [vmem:[#allocation8 + $0x288] sm:$0xff]
        %v877 = vld [vmem:[#allocation8 + $0x290] sm:$0xff]
        %v878 = vld [vmem:[#allocation8 + $0x298] sm:$0xff]
        %v879 = vld [vmem:[#allocation8 + $0x2a0] sm:$0xff]
        %v880 = vld [vmem:[#allocation8 + $0x2a8] sm:$0xff]
        %v881 = vld [vmem:[#allocation8 + $0x2b0] sm:$0xff]
        %v882 = vld [vmem:[#allocation8 + $0x2b8] sm:$0xff]
        %v883 = vld [vmem:[#allocation8 + $0x2c0] sm:$0xff]
        %v884 = vld [vmem:[#allocation8 + $0x2c8] sm:$0xff]
        %v885 = vld [vmem:[#allocation8 + $0x2d0] sm:$0xff]
        %v886 = vld [vmem:[#allocation8 + $0x2d8] sm:$0xff]
        %v887 = vld [vmem:[#allocation8 + $0x2e0] sm:$0xff]
        %v888 = vld [vmem:[#allocation8 + $0x2e8] sm:$0xff]
        %v889 = vld [vmem:[#allocation8 + $0x2f0] sm:$0xff]
        %v890 = vld [vmem:[#allocation8 + $0x2f8] sm:$0xff]
        %v891 = vld [vmem:[#allocation10] sm:$0x3f]
        %v893 = vlaneseq
        %v894 = vshrl.u32 %v893, 7
        %v895 = vsub.s32 0, %v894
        %v896 = vrot.slane %v891, %v895
        %v897 = vlaneseq
        %v898 = vshrl.u32 %v897, 7
        %v899 = vsub.s32 1, %v898
        %v900 = vrot.slane %v891, %v899
        %v901 = vlaneseq
        %v902 = vshrl.u32 %v901, 7
        %v903 = vsub.s32 2, %v902
        %v904 = vrot.slane %v891, %v903
        %v905 = vlaneseq
        %v906 = vshrl.u32 %v905, 7
        %v907 = vsub.s32 3, %v906
        %v908 = vrot.slane %v891, %v907
        %v909 = vlaneseq
        %v910 = vshrl.u32 %v909, 7
        %v911 = vsub.s32 4, %v910
        %v912 = vrot.slane %v891, %v911
        %v913 = vlaneseq
        %v914 = vshrl.u32 %v913, 7
        %v915 = vsub.s32 5, %v914
        %v916 = vrot.slane %v891, %v915
        %v1019 = vunpack.c.l.b16 %v795
        %v1020 = vunpack.c.h.b16 %v795
        %v1021 = vunpack.c.l.b16 %v796
        %v1022 = vunpack.c.h.b16 %v796
        %v1023 = vunpack.c.l.b16 %v797
        %v1024 = vunpack.c.h.b16 %v797
        %v1025 = vunpack.c.l.b16 %v798
        %v1026 = vunpack.c.h.b16 %v798
        %v1027 = vunpack.c.l.b16 %v799
        %v1028 = vunpack.c.h.b16 %v799
        %v1029 = vunpack.c.l.b16 %v800
        %v1030 = vunpack.c.h.b16 %v800
        %v1031 = vunpack.c.l.b16 %v801
        %v1032 = vunpack.c.h.b16 %v801
        %v1033 = vunpack.c.l.b16 %v802
        %v1034 = vunpack.c.h.b16 %v802
        %v1035 = vunpack.c.l.b16 %v803
        %v1036 = vunpack.c.h.b16 %v803
        %v1037 = vunpack.c.l.b16 %v804
        %v1038 = vunpack.c.h.b16 %v804
        %v1039 = vunpack.c.l.b16 %v805
        %v1040 = vunpack.c.h.b16 %v805
        %v1041 = vunpack.c.l.b16 %v806
        %v1042 = vunpack.c.h.b16 %v806
        %v1043 = vunpack.c.l.b16 %v807
        %v1044 = vunpack.c.h.b16 %v807
        %v1045 = vunpack.c.l.b16 %v808
        %v1046 = vunpack.c.h.b16 %v808
        %v1047 = vunpack.c.l.b16 %v809
        %v1048 = vunpack.c.h.b16 %v809
        %v1049 = vunpack.c.l.b16 %v810
        %v1050 = vunpack.c.h.b16 %v810
        %v1051 = vunpack.c.l.b16 %v811
        %v1052 = vunpack.c.h.b16 %v811
        %v1053 = vunpack.c.l.b16 %v812
        %v1054 = vunpack.c.h.b16 %v812
        %v1055 = vunpack.c.l.b16 %v813
        %v1056 = vunpack.c.h.b16 %v813
        %v1057 = vunpack.c.l.b16 %v814
        %v1058 = vunpack.c.h.b16 %v814
        %v1059 = vunpack.c.l.b16 %v815
        %v1060 = vunpack.c.h.b16 %v815
        %v1061 = vunpack.c.l.b16 %v816
        %v1062 = vunpack.c.h.b16 %v816
        %v1063 = vunpack.c.l.b16 %v817
        %v1064 = vunpack.c.h.b16 %v817
        %v1065 = vunpack.c.l.b16 %v818
        %v1066 = vunpack.c.h.b16 %v818
        %v1067 = vunpack.c.l.b16 %v819
        %v1068 = vunpack.c.h.b16 %v819
        %v1069 = vunpack.c.l.b16 %v820
        %v1070 = vunpack.c.h.b16 %v820
        %v1071 = vunpack.c.l.b16 %v821
        %v1072 = vunpack.c.h.b16 %v821
        %v1073 = vunpack.c.l.b16 %v822
        %v1074 = vunpack.c.h.b16 %v822
        %v1075 = vunpack.c.l.b16 %v823
        %v1076 = vunpack.c.h.b16 %v823
        %v1077 = vunpack.c.l.b16 %v824
        %v1078 = vunpack.c.h.b16 %v824
        %v1079 = vunpack.c.l.b16 %v825
        %v1080 = vunpack.c.h.b16 %v825
        %v1081 = vunpack.c.l.b16 %v826
        %v1082 = vunpack.c.h.b16 %v826
        %v1083 = vunpack.c.l.b16 %v827
        %v1084 = vunpack.c.h.b16 %v827
        %v1085 = vunpack.c.l.b16 %v828
        %v1086 = vunpack.c.h.b16 %v828
        %v1087 = vunpack.c.l.b16 %v829
        %v1088 = vunpack.c.h.b16 %v829
        %v1089 = vunpack.c.l.b16 %v830
        %v1090 = vunpack.c.h.b16 %v830
        %v1091 = vunpack.c.l.b16 %v831
        %v1092 = vunpack.c.h.b16 %v831
        %v1093 = vunpack.c.l.b16 %v832
        %v1094 = vunpack.c.h.b16 %v832
        %v1095 = vunpack.c.l.b16 %v833
        %v1096 = vunpack.c.h.b16 %v833
        %v1097 = vunpack.c.l.b16 %v834
        %v1098 = vunpack.c.h.b16 %v834
        %v1099 = vunpack.c.l.b16 %v835
        %v1100 = vunpack.c.h.b16 %v835
        %v1101 = vunpack.c.l.b16 %v836
        %v1102 = vunpack.c.h.b16 %v836
        %v1103 = vunpack.c.l.b16 %v837
        %v1104 = vunpack.c.h.b16 %v837
        %v1105 = vunpack.c.l.b16 %v838
        %v1106 = vunpack.c.h.b16 %v838
        %v1107 = vunpack.c.l.b16 %v839
        %v1108 = vunpack.c.h.b16 %v839
        %v1109 = vunpack.c.l.b16 %v840
        %v1110 = vunpack.c.h.b16 %v840
        %v1111 = vunpack.c.l.b16 %v841
        %v1112 = vunpack.c.h.b16 %v841
        %v1113 = vunpack.c.l.b16 %v842
        %v1114 = vunpack.c.h.b16 %v842
        %v1115 = vunpack.c.l.b16 %v843
        %v1116 = vunpack.c.h.b16 %v843
        %v1117 = vunpack.c.l.b16 %v844
        %v1118 = vunpack.c.h.b16 %v844
        %v1119 = vunpack.c.l.b16 %v845
        %v1120 = vunpack.c.h.b16 %v845
        %v1121 = vunpack.c.l.b16 %v846
        %v1122 = vunpack.c.h.b16 %v846
        %v1123 = vunpack.c.l.b16 %v847
        %v1124 = vunpack.c.h.b16 %v847
        %v1125 = vunpack.c.l.b16 %v848
        %v1126 = vunpack.c.h.b16 %v848
        %v1127 = vunpack.c.l.b16 %v849
        %v1128 = vunpack.c.h.b16 %v849
        %v1129 = vunpack.c.l.b16 %v850
        %v1130 = vunpack.c.h.b16 %v850
        %v1131 = vunpack.c.l.b16 %v851
        %v1132 = vunpack.c.h.b16 %v851
        %v1133 = vunpack.c.l.b16 %v852
        %v1134 = vunpack.c.h.b16 %v852
        %v1135 = vunpack.c.l.b16 %v853
        %v1136 = vunpack.c.h.b16 %v853
        %v1137 = vunpack.c.l.b16 %v854
        %v1138 = vunpack.c.h.b16 %v854
        %v1139 = vunpack.c.l.b16 %v855
        %v1140 = vunpack.c.h.b16 %v855
        %v1141 = vunpack.c.l.b16 %v856
        %v1142 = vunpack.c.h.b16 %v856
        %v1143 = vunpack.c.l.b16 %v857
        %v1144 = vunpack.c.h.b16 %v857
        %v1145 = vunpack.c.l.b16 %v858
        %v1146 = vunpack.c.h.b16 %v858
        %v1147 = vunpack.c.l.b16 %v859
        %v1148 = vunpack.c.h.b16 %v859
        %v1149 = vunpack.c.l.b16 %v860
        %v1150 = vunpack.c.h.b16 %v860
        %v1151 = vunpack.c.l.b16 %v861
        %v1152 = vunpack.c.h.b16 %v861
        %v1153 = vunpack.c.l.b16 %v862
        %v1154 = vunpack.c.h.b16 %v862
        %v1155 = vunpack.c.l.b16 %v863
        %v1156 = vunpack.c.h.b16 %v863
        %v1157 = vunpack.c.l.b16 %v864
        %v1158 = vunpack.c.h.b16 %v864
        %v1159 = vunpack.c.l.b16 %v865
        %v1160 = vunpack.c.h.b16 %v865
        %v1161 = vunpack.c.l.b16 %v866
        %v1162 = vunpack.c.h.b16 %v866
        %v1163 = vunpack.c.l.b16 %v867
        %v1164 = vunpack.c.h.b16 %v867
        %v1165 = vunpack.c.l.b16 %v868
        %v1166 = vunpack.c.h.b16 %v868
        %v1167 = vunpack.c.l.b16 %v869
        %v1168 = vunpack.c.h.b16 %v869
        %v1169 = vunpack.c.l.b16 %v870
        %v1170 = vunpack.c.h.b16 %v870
        %v1171 = vunpack.c.l.b16 %v871
        %v1172 = vunpack.c.h.b16 %v871
        %v1173 = vunpack.c.l.b16 %v872
        %v1174 = vunpack.c.h.b16 %v872
        %v1175 = vunpack.c.l.b16 %v873
        %v1176 = vunpack.c.h.b16 %v873
        %v1177 = vunpack.c.l.b16 %v874
        %v1178 = vunpack.c.h.b16 %v874
        %v1179 = vunpack.c.l.b16 %v875
        %v1180 = vunpack.c.h.b16 %v875
        %v1181 = vunpack.c.l.b16 %v876
        %v1182 = vunpack.c.h.b16 %v876
        %v1183 = vunpack.c.l.b16 %v877
        %v1184 = vunpack.c.h.b16 %v877
        %v1185 = vunpack.c.l.b16 %v878
        %v1186 = vunpack.c.h.b16 %v878
        %v1187 = vunpack.c.l.b16 %v879
        %v1188 = vunpack.c.h.b16 %v879
        %v1189 = vunpack.c.l.b16 %v880
        %v1190 = vunpack.c.h.b16 %v880
        %v1191 = vunpack.c.l.b16 %v881
        %v1192 = vunpack.c.h.b16 %v881
        %v1193 = vunpack.c.l.b16 %v882
        %v1194 = vunpack.c.h.b16 %v882
        %v1195 = vunpack.c.l.b16 %v883
        %v1196 = vunpack.c.h.b16 %v883
        %v1197 = vunpack.c.l.b16 %v884
        %v1198 = vunpack.c.h.b16 %v884
        %v1199 = vunpack.c.l.b16 %v885
        %v1200 = vunpack.c.h.b16 %v885
        %v1201 = vunpack.c.l.b16 %v886
        %v1202 = vunpack.c.h.b16 %v886
        %v1203 = vunpack.c.l.b16 %v887
        %v1204 = vunpack.c.h.b16 %v887
        %v1205 = vunpack.c.l.b16 %v888
        %v1206 = vunpack.c.h.b16 %v888
        %v1207 = vunpack.c.l.b16 %v889
        %v1208 = vunpack.c.h.b16 %v889
        %v1209 = vunpack.c.l.b16 %v890
        %v1210 = vunpack.c.h.b16 %v890
        %v1211 = vpack.c.b16 %v1025, %v1019
        %v1212 = vpack.c.b16 %v1026, %v1020
        %v1213 = vpack.c.b16 %v1027, %v1021
        %v1214 = vpack.c.b16 %v1028, %v1022
        %v1215 = vpack.c.b16 %v1029, %v1023
        %v1216 = vpack.c.b16 %v1030, %v1024
        %v1217 = vpack.c.b16 %v1037, %v1031
        %v1218 = vpack.c.b16 %v1038, %v1032
        %v1219 = vpack.c.b16 %v1039, %v1033
        %v1220 = vpack.c.b16 %v1040, %v1034
        %v1221 = vpack.c.b16 %v1041, %v1035
        %v1222 = vpack.c.b16 %v1042, %v1036
        %v1223 = vpack.c.b16 %v1049, %v1043
        %v1224 = vpack.c.b16 %v1050, %v1044
        %v1225 = vpack.c.b16 %v1051, %v1045
        %v1226 = vpack.c.b16 %v1052, %v1046
        %v1227 = vpack.c.b16 %v1053, %v1047
        %v1228 = vpack.c.b16 %v1054, %v1048
        %v1229 = vpack.c.b16 %v1061, %v1055
        %v1230 = vpack.c.b16 %v1062, %v1056
        %v1231 = vpack.c.b16 %v1063, %v1057
        %v1232 = vpack.c.b16 %v1064, %v1058
        %v1233 = vpack.c.b16 %v1065, %v1059
        %v1234 = vpack.c.b16 %v1066, %v1060
        %v1235 = vpack.c.b16 %v1073, %v1067
        %v1236 = vpack.c.b16 %v1074, %v1068
        %v1237 = vpack.c.b16 %v1075, %v1069
        %v1238 = vpack.c.b16 %v1076, %v1070
        %v1239 = vpack.c.b16 %v1077, %v1071
        %v1240 = vpack.c.b16 %v1078, %v1072
        %v1241 = vpack.c.b16 %v1085, %v1079
        %v1242 = vpack.c.b16 %v1086, %v1080
        %v1243 = vpack.c.b16 %v1087, %v1081
        %v1244 = vpack.c.b16 %v1088, %v1082
        %v1245 = vpack.c.b16 %v1089, %v1083
        %v1246 = vpack.c.b16 %v1090, %v1084
        %v1247 = vpack.c.b16 %v1097, %v1091
        %v1248 = vpack.c.b16 %v1098, %v1092
        %v1249 = vpack.c.b16 %v1099, %v1093
        %v1250 = vpack.c.b16 %v1100, %v1094
        %v1251 = vpack.c.b16 %v1101, %v1095
        %v1252 = vpack.c.b16 %v1102, %v1096
        %v1253 = vpack.c.b16 %v1109, %v1103
        %v1254 = vpack.c.b16 %v1110, %v1104
        %v1255 = vpack.c.b16 %v1111, %v1105
        %v1256 = vpack.c.b16 %v1112, %v1106
        %v1257 = vpack.c.b16 %v1113, %v1107
        %v1258 = vpack.c.b16 %v1114, %v1108
        %v1259 = vpack.c.b16 %v1121, %v1115
        %v1260 = vpack.c.b16 %v1122, %v1116
        %v1261 = vpack.c.b16 %v1123, %v1117
        %v1262 = vpack.c.b16 %v1124, %v1118
        %v1263 = vpack.c.b16 %v1125, %v1119
        %v1264 = vpack.c.b16 %v1126, %v1120
        %v1265 = vpack.c.b16 %v1133, %v1127
        %v1266 = vpack.c.b16 %v1134, %v1128
        %v1267 = vpack.c.b16 %v1135, %v1129
        %v1268 = vpack.c.b16 %v1136, %v1130
        %v1269 = vpack.c.b16 %v1137, %v1131
        %v1270 = vpack.c.b16 %v1138, %v1132
        %v1271 = vpack.c.b16 %v1145, %v1139
        %v1272 = vpack.c.b16 %v1146, %v1140
        %v1273 = vpack.c.b16 %v1147, %v1141
        %v1274 = vpack.c.b16 %v1148, %v1142
        %v1275 = vpack.c.b16 %v1149, %v1143
        %v1276 = vpack.c.b16 %v1150, %v1144
        %v1277 = vpack.c.b16 %v1157, %v1151
        %v1278 = vpack.c.b16 %v1158, %v1152
        %v1279 = vpack.c.b16 %v1159, %v1153
        %v1280 = vpack.c.b16 %v1160, %v1154
        %v1281 = vpack.c.b16 %v1161, %v1155
        %v1282 = vpack.c.b16 %v1162, %v1156
        %v1283 = vpack.c.b16 %v1169, %v1163
        %v1284 = vpack.c.b16 %v1170, %v1164
        %v1285 = vpack.c.b16 %v1171, %v1165
        %v1286 = vpack.c.b16 %v1172, %v1166
        %v1287 = vpack.c.b16 %v1173, %v1167
        %v1288 = vpack.c.b16 %v1174, %v1168
        %v1289 = vpack.c.b16 %v1181, %v1175
        %v1290 = vpack.c.b16 %v1182, %v1176
        %v1291 = vpack.c.b16 %v1183, %v1177
        %v1292 = vpack.c.b16 %v1184, %v1178
        %v1293 = vpack.c.b16 %v1185, %v1179
        %v1294 = vpack.c.b16 %v1186, %v1180
        %v1295 = vpack.c.b16 %v1193, %v1187
        %v1296 = vpack.c.b16 %v1194, %v1188
        %v1297 = vpack.c.b16 %v1195, %v1189
        %v1298 = vpack.c.b16 %v1196, %v1190
        %v1299 = vpack.c.b16 %v1197, %v1191
        %v1300 = vpack.c.b16 %v1198, %v1192
        %v1301 = vpack.c.b16 %v1205, %v1199
        %v1302 = vpack.c.b16 %v1206, %v1200
        %v1303 = vpack.c.b16 %v1207, %v1201
        %v1304 = vpack.c.b16 %v1208, %v1202
        %v1305 = vpack.c.b16 %v1209, %v1203
        %v1306 = vpack.c.b16 %v1210, %v1204
        %1403 = vmatprep.subr.bf16.mxu0 %v1212
        %1404 = vmatpush1.bf16.msra.mxu0 %v1211
        %1405 = vmatprep.subr.bf16.mxu0 %v1218
        %1406 = vmatpush1.bf16.msra.mxu0 %v1217
        %1407 = vmatprep.subr.bf16.mxu0 %v1224
        %1408 = vmatpush1.bf16.msra.mxu0 %v1223
        %1409 = vmatprep.subr.bf16.mxu0 %v1230
        %1410 = vmatpush1.bf16.msra.mxu0 %v1229
        %1411 = vmatprep.subr.bf16.mxu0 %v1236
        %1412 = vmatpush1.bf16.msra.mxu0 %v1235
        %1413 = vmatprep.subr.bf16.mxu0 %v1242
        %1414 = vmatpush1.bf16.msra.mxu0 %v1241
        %1415 = vmatprep.subr.bf16.mxu0 %v1248
        %1416 = vmatpush1.bf16.msra.mxu0 %v1247
        %1417 = vmatprep.subr.bf16.mxu0 %v1254
        %1418 = vmatpush1.bf16.msra.mxu0 %v1253
        %1419 = vmatprep.subr.bf16.mxu0 %v1260
        %1420 = vmatpush1.bf16.msra.mxu0 %v1259
        %1421 = vmatprep.subr.bf16.mxu0 %v1266
        %1422 = vmatpush1.bf16.msra.mxu0 %v1265
        %1423 = vmatprep.subr.bf16.mxu0 %v1272
        %1424 = vmatpush1.bf16.msra.mxu0 %v1271
        %1425 = vmatprep.subr.bf16.mxu0 %v1278
        %1426 = vmatpush1.bf16.msra.mxu0 %v1277
        %1427 = vmatprep.subr.bf16.mxu0 %v1284
        %1428 = vmatpush1.bf16.msra.mxu0 %v1283
        %1429 = vmatprep.subr.bf16.mxu0 %v1290
        %1430 = vmatpush1.bf16.msra.mxu0 %v1289
        %1431 = vmatprep.subr.bf16.mxu0 %v1296
        %1432 = vmatpush1.bf16.msra.mxu0 %v1295
        %1433 = vmatprep.subr.bf16.mxu0 %v1302
        %1434 = vmatpush1.bf16.msra.mxu0 %v1301
        %1435 = vmatprep.mubr.bf16.mxu0 %v780
        %1436 = vmatmul.mubr.bf16.gmra.mrb[0].mxu0 %v779
        %v1437 = vpop.f32.mrb[0].mxu0
        %v1438 = vadd.f32 %v896, %v1437
        %v1439 = vpop.f32.mrb[0].mxu0
        %v1440 = vadd.f32 %v900, %v1439
        %v1441 = vpop.f32.mrb[0].mxu0
        %v1442 = vadd.f32 %v896, %v1441
        %v1443 = vpop.f32.mrb[0].mxu0
        %v1444 = vadd.f32 %v900, %v1443
        %1445 = vmatprep.mubr.bf16.mxu0 %v782
        %1446 = vmatmul.mubr.bf16.gmra.mrb[0].mxu0 %v781
        %v1447 = vpop.f32.mrb[0].mxu0
        %v1448 = vadd.f32 %v896, %v1447
        %v1449 = vpop.f32.mrb[0].mxu0
        %v1450 = vadd.f32 %v900, %v1449
        %v1451 = vpop.f32.mrb[0].mxu0
        %v1452 = vadd.f32 %v896, %v1451
        %v1453 = vpop.f32.mrb[0].mxu0
        %v1454 = vadd.f32 %v900, %v1453
        %1455 = vmatprep.mubr.bf16.mxu0 %v784
        %1456 = vmatmul.mubr.bf16.gmra.mrb[0].mxu0 %v783
        %v1457 = vpop.f32.mrb[0].mxu0
        %v1458 = vadd.f32 %v896, %v1457
        %v1459 = vpop.f32.mrb[0].mxu0
        %v1460 = vadd.f32 %v900, %v1459
        %v1461 = vpop.f32.mrb[0].mxu0
        %v1462 = vadd.f32 %v896, %v1461
        %v1463 = vpop.f32.mrb[0].mxu0
        %v1464 = vadd.f32 %v900, %v1463
        %1465 = vmatprep.mubr.bf16.mxu0 %v786
        %1466 = vmatmul.mubr.bf16.gmra.mrb[0].mxu0 %v785
        %v1467 = vpop.f32.mrb[0].mxu0
        %v1468 = vadd.f32 %v896, %v1467
        %v1469 = vpop.f32.mrb[0].mxu0
        %v1470 = vadd.f32 %v900, %v1469
        %v1471 = vpop.f32.mrb[0].mxu0
        %v1472 = vadd.f32 %v896, %v1471
        %v1473 = vpop.f32.mrb[0].mxu0
        %v1474 = vadd.f32 %v900, %v1473
        %1475 = vmatprep.mubr.bf16.mxu0 %v788
        %1476 = vmatmul.mubr.bf16.gmra.mrb[0].mxu0 %v787
        %v1477 = vpop.f32.mrb[0].mxu0
        %v1478 = vadd.f32 %v896, %v1477
        %v1479 = vpop.f32.mrb[0].mxu0
        %v1480 = vadd.f32 %v900, %v1479
        %v1481 = vpop.f32.mrb[0].mxu0
        %v1482 = vadd.f32 %v896, %v1481
        %v1483 = vpop.f32.mrb[0].mxu0
        %v1484 = vadd.f32 %v900, %v1483
        %1485 = vmatprep.mubr.bf16.mxu0 %v790
        %1486 = vmatmul.mubr.bf16.gmra.mrb[0].mxu0 %v789
        %v1487 = vpop.f32.mrb[0].mxu0
        %v1488 = vadd.f32 %v896, %v1487
        %v1489 = vpop.f32.mrb[0].mxu0
        %v1490 = vadd.f32 %v900, %v1489
        %v1491 = vpop.f32.mrb[0].mxu0
        %v1492 = vadd.f32 %v896, %v1491
        %v1493 = vpop.f32.mrb[0].mxu0
        %v1494 = vadd.f32 %v900, %v1493
        %1495 = vmatprep.mubr.bf16.mxu0 %v792
        %1496 = vmatmul.mubr.bf16.gmra.mrb[0].mxu0 %v791
        %v1497 = vpop.f32.mrb[0].mxu0
        %v1498 = vadd.f32 %v896, %v1497
        %v1499 = vpop.f32.mrb[0].mxu0
        %v1500 = vadd.f32 %v900, %v1499
        %v1501 = vpop.f32.mrb[0].mxu0
        %v1502 = vadd.f32 %v896, %v1501
        %v1503 = vpop.f32.mrb[0].mxu0
        %v1504 = vadd.f32 %v900, %v1503
        %1505 = vmatprep.mubr.bf16.mxu0 %v794
        %1506 = vmatmul.mubr.bf16.gmra.mrb[0].mxu0 %v793
        %v1507 = vpop.f32.mrb[0].mxu0
        %v1508 = vadd.f32 %v896, %v1507
        %v1509 = vpop.f32.mrb[0].mxu0
        %v1510 = vadd.f32 %v900, %v1509
        %v1511 = vpop.f32.mrb[0].mxu0
        %v1512 = vadd.f32 %v896, %v1511
        %v1513 = vpop.f32.mrb[0].mxu0
        %v1514 = vadd.f32 %v900, %v1513
        %1515 = vdwg.mxu0
        %1516 = vmatprep.subr.bf16.mxu0 %v1214
        %1517 = vmatpush1.bf16.msra.mxu0 %v1213
        %1518 = vmatprep.subr.bf16.mxu0 %v1220
        %1519 = vmatpush1.bf16.msra.mxu0 %v1219
        %1520 = vmatprep.subr.bf16.mxu0 %v1226
        %1521 = vmatpush1.bf16.msra.mxu0 %v1225
        %1522 = vmatprep.subr.bf16.mxu0 %v1232
        %1523 = vmatpush1.bf16.msra.mxu0 %v1231
        %1524 = vmatprep.subr.bf16.mxu0 %v1238
        %1525 = vmatpush1.bf16.msra.mxu0 %v1237
        %1526 = vmatprep.subr.bf16.mxu0 %v1244
        %1527 = vmatpush1.bf16.msra.mxu0 %v1243
        %1528 = vmatprep.subr.bf16.mxu0 %v1250
        %1529 = vmatpush1.bf16.msra.mxu0 %v1249
        %1530 = vmatprep.subr.bf16.mxu0 %v1256
        %1531 = vmatpush1.bf16.msra.mxu0 %v1255
        %1532 = vmatprep.subr.bf16.mxu0 %v1262
        %1533 = vmatpush1.bf16.msra.mxu0 %v1261
        %1534 = vmatprep.subr.bf16.mxu0 %v1268
        %1535 = vmatpush1.bf16.msra.mxu0 %v1267
        %1536 = vmatprep.subr.bf16.mxu0 %v1274
        %1537 = vmatpush1.bf16.msra.mxu0 %v1273
        %1538 = vmatprep.subr.bf16.mxu0 %v1280
        %1539 = vmatpush1.bf16.msra.mxu0 %v1279
        %1540 = vmatprep.subr.bf16.mxu0 %v1286
        %1541 = vmatpush1.bf16.msra.mxu0 %v1285
        %1542 = vmatprep.subr.bf16.mxu0 %v1292
        %1543 = vmatpush1.bf16.msra.mxu0 %v1291
        %1544 = vmatprep.subr.bf16.mxu0 %v1298
        %1545 = vmatpush1.bf16.msra.mxu0 %v1297
        %1546 = vmatprep.subr.bf16.mxu0 %v1304
        %1547 = vmatpush1.bf16.msra.mxu0 %v1303
        %1548 = vmatprep.mubr.bf16.mxu0 %v780
        %1549 = vmatmul.mubr.bf16.gmra.mrb[0].mxu0 %v779
        %v1550 = vpop.f32.mrb[0].mxu0
        %v1551 = vadd.f32 %v904, %v1550
        %v1552 = vpop.f32.mrb[0].mxu0
        %v1553 = vadd.f32 %v908, %v1552
        %v1554 = vpop.f32.mrb[0].mxu0
        %v1555 = vadd.f32 %v904, %v1554
        %v1556 = vpop.f32.mrb[0].mxu0
        %v1557 = vadd.f32 %v908, %v1556
        %1558 = vmatprep.mubr.bf16.mxu0 %v782
        %1559 = vmatmul.mubr.bf16.gmra.mrb[0].mxu0 %v781
        %v1560 = vpop.f32.mrb[0].mxu0
        %v1561 = vadd.f32 %v904, %v1560
        %v1562 = vpop.f32.mrb[0].mxu0
        %v1563 = vadd.f32 %v908, %v1562
        %v1564 = vpop.f32.mrb[0].mxu0
        %v1565 = vadd.f32 %v904, %v1564
        %v1566 = vpop.f32.mrb[0].mxu0
        %v1567 = vadd.f32 %v908, %v1566
        %1568 = vmatprep.mubr.bf16.mxu0 %v784
        %1569 = vmatmul.mubr.bf16.gmra.mrb[0].mxu0 %v783
        %v1570 = vpop.f32.mrb[0].mxu0
        %v1571 = vadd.f32 %v904, %v1570
        %v1572 = vpop.f32.mrb[0].mxu0
        %v1573 = vadd.f32 %v908, %v1572
        %v1574 = vpop.f32.mrb[0].mxu0
        %v1575 = vadd.f32 %v904, %v1574
        %v1576 = vpop.f32.mrb[0].mxu0
        %v1577 = vadd.f32 %v908, %v1576
        %1578 = vmatprep.mubr.bf16.mxu0 %v786
        %1579 = vmatmul.mubr.bf16.gmra.mrb[0].mxu0 %v785
        %v1580 = vpop.f32.mrb[0].mxu0
        %v1581 = vadd.f32 %v904, %v1580
        %v1582 = vpop.f32.mrb[0].mxu0
        %v1583 = vadd.f32 %v908, %v1582
        %v1584 = vpop.f32.mrb[0].mxu0
        %v1585 = vadd.f32 %v904, %v1584
        %v1586 = vpop.f32.mrb[0].mxu0
        %v1587 = vadd.f32 %v908, %v1586
        %1588 = vmatprep.mubr.bf16.mxu0 %v788
        %1589 = vmatmul.mubr.bf16.gmra.mrb[0].mxu0 %v787
        %v1590 = vpop.f32.mrb[0].mxu0
        %v1591 = vadd.f32 %v904, %v1590
        %v1592 = vpop.f32.mrb[0].mxu0
        %v1593 = vadd.f32 %v908, %v1592
        %v1594 = vpop.f32.mrb[0].mxu0
        %v1595 = vadd.f32 %v904, %v1594
        %v1596 = vpop.f32.mrb[0].mxu0
        %v1597 = vadd.f32 %v908, %v1596
        %1598 = vmatprep.mubr.bf16.mxu0 %v790
        %1599 = vmatmul.mubr.bf16.gmra.mrb[0].mxu0 %v789
        %v1600 = vpop.f32.mrb[0].mxu0
        %v1601 = vadd.f32 %v904, %v1600
        %v1602 = vpop.f32.mrb[0].mxu0
        %v1603 = vadd.f32 %v908, %v1602
        %v1604 = vpop.f32.mrb[0].mxu0
        %v1605 = vadd.f32 %v904, %v1604
        %v1606 = vpop.f32.mrb[0].mxu0
        %v1607 = vadd.f32 %v908, %v1606
        %1608 = vmatprep.mubr.bf16.mxu0 %v792
        %1609 = vmatmul.mubr.bf16.gmra.mrb[0].mxu0 %v791
        %v1610 = vpop.f32.mrb[0].mxu0
        %v1611 = vadd.f32 %v904, %v1610
        %v1612 = vpop.f32.mrb[0].mxu0
        %v1613 = vadd.f32 %v908, %v1612
        %v1614 = vpop.f32.mrb[0].mxu0
        %v1615 = vadd.f32 %v904, %v1614
        %v1616 = vpop.f32.mrb[0].mxu0
        %v1617 = vadd.f32 %v908, %v1616
        %1618 = vmatprep.mubr.bf16.mxu0 %v794
        %1619 = vmatmul.mubr.bf16.gmra.mrb[0].mxu0 %v793
        %v1620 = vpop.f32.mrb[0].mxu0
        %v1621 = vadd.f32 %v904, %v1620
        %v1622 = vpop.f32.mrb[0].mxu0
        %v1623 = vadd.f32 %v908, %v1622
        %v1624 = vpop.f32.mrb[0].mxu0
        %v1625 = vadd.f32 %v904, %v1624
        %v1626 = vpop.f32.mrb[0].mxu0
        %v1627 = vadd.f32 %v908, %v1626
        %1628 = vdwg.mxu0
        %1629 = vmatprep.subr.bf16.mxu0 %v1216
        %1630 = vmatpush1.bf16.msra.mxu0 %v1215
        %1631 = vmatprep.subr.bf16.mxu0 %v1222
        %1632 = vmatpush1.bf16.msra.mxu0 %v1221
        %1633 = vmatprep.subr.bf16.mxu0 %v1228
        %1634 = vmatpush1.bf16.msra.mxu0 %v1227
        %1635 = vmatprep.subr.bf16.mxu0 %v1234
        %1636 = vmatpush1.bf16.msra.mxu0 %v1233
        %1637 = vmatprep.subr.bf16.mxu0 %v1240
        %1638 = vmatpush1.bf16.msra.mxu0 %v1239
        %1639 = vmatprep.subr.bf16.mxu0 %v1246
        %1640 = vmatpush1.bf16.msra.mxu0 %v1245
        %1641 = vmatprep.subr.bf16.mxu0 %v1252
        %1642 = vmatpush1.bf16.msra.mxu0 %v1251
        %1643 = vmatprep.subr.bf16.mxu0 %v1258
        %1644 = vmatpush1.bf16.msra.mxu0 %v1257
        %1645 = vmatprep.subr.bf16.mxu0 %v1264
        %1646 = vmatpush1.bf16.msra.mxu0 %v1263
        %1647 = vmatprep.subr.bf16.mxu0 %v1270
        %1648 = vmatpush1.bf16.msra.mxu0 %v1269
        %1649 = vmatprep.subr.bf16.mxu0 %v1276
        %1650 = vmatpush1.bf16.msra.mxu0 %v1275
        %1651 = vmatprep.subr.bf16.mxu0 %v1282
        %1652 = vmatpush1.bf16.msra.mxu0 %v1281
        %1653 = vmatprep.subr.bf16.mxu0 %v1288
        %1654 = vmatpush1.bf16.msra.mxu0 %v1287
        %1655 = vmatprep.subr.bf16.mxu0 %v1294
        %1656 = vmatpush1.bf16.msra.mxu0 %v1293
        %1657 = vmatprep.subr.bf16.mxu0 %v1300
        %1658 = vmatpush1.bf16.msra.mxu0 %v1299
        %1659 = vmatprep.subr.bf16.mxu0 %v1306
        %1660 = vmatpush1.bf16.msra.mxu0 %v1305
        %1661 = vmatprep.mubr.bf16.mxu0 %v780
        %1662 = vmatmul.mubr.bf16.gmra.mrb[0].mxu0 %v779
        %v1663 = vpop.f32.mrb[0].mxu0
        %v1664 = vadd.f32 %v912, %v1663
        %v1665 = vpop.f32.mrb[0].mxu0
        %v1666 = vadd.f32 %v916, %v1665
        %v1667 = vpop.f32.mrb[0].mxu0
        %v1668 = vadd.f32 %v912, %v1667
        %v1669 = vpop.f32.mrb[0].mxu0
        %v1670 = vadd.f32 %v916, %v1669
        %1671 = vmatprep.mubr.bf16.mxu0 %v782
        %1672 = vmatmul.mubr.bf16.gmra.mrb[0].mxu0 %v781
        %v1673 = vpop.f32.mrb[0].mxu0
        %v1674 = vadd.f32 %v912, %v1673
        %v1675 = vpop.f32.mrb[0].mxu0
        %v1676 = vadd.f32 %v916, %v1675
        %v1677 = vpop.f32.mrb[0].mxu0
        %v1678 = vadd.f32 %v912, %v1677
        %v1679 = vpop.f32.mrb[0].mxu0
        %v1680 = vadd.f32 %v916, %v1679
        %1681 = vmatprep.mubr.bf16.mxu0 %v784
        %1682 = vmatmul.mubr.bf16.gmra.mrb[0].mxu0 %v783
        %v1683 = vpop.f32.mrb[0].mxu0
        %v1684 = vadd.f32 %v912, %v1683
        %v1685 = vpop.f32.mrb[0].mxu0
        %v1686 = vadd.f32 %v916, %v1685
        %v1687 = vpop.f32.mrb[0].mxu0
        %v1688 = vadd.f32 %v912, %v1687
        %v1689 = vpop.f32.mrb[0].mxu0
        %v1690 = vadd.f32 %v916, %v1689
        %1691 = vmatprep.mubr.bf16.mxu0 %v786
        %1692 = vmatmul.mubr.bf16.gmra.mrb[0].mxu0 %v785
        %v1693 = vpop.f32.mrb[0].mxu0
        %v1694 = vadd.f32 %v912, %v1693
        %v1695 = vpop.f32.mrb[0].mxu0
        %v1696 = vadd.f32 %v916, %v1695
        %v1697 = vpop.f32.mrb[0].mxu0
        %v1698 = vadd.f32 %v912, %v1697
        %v1699 = vpop.f32.mrb[0].mxu0
        %v1700 = vadd.f32 %v916, %v1699
        %1701 = vmatprep.mubr.bf16.mxu0 %v788
        %1702 = vmatmul.mubr.bf16.gmra.mrb[0].mxu0 %v787
        %v1703 = vpop.f32.mrb[0].mxu0
        %v1704 = vadd.f32 %v912, %v1703
        %v1705 = vpop.f32.mrb[0].mxu0
        %v1706 = vadd.f32 %v916, %v1705
        %v1707 = vpop.f32.mrb[0].mxu0
        %v1708 = vadd.f32 %v912, %v1707
        %v1709 = vpop.f32.mrb[0].mxu0
        %v1710 = vadd.f32 %v916, %v1709
        %1711 = vmatprep.mubr.bf16.mxu0 %v790
        %1712 = vmatmul.mubr.bf16.gmra.mrb[0].mxu0 %v789
        %v1713 = vpop.f32.mrb[0].mxu0
        %v1714 = vadd.f32 %v912, %v1713
        %v1715 = vpop.f32.mrb[0].mxu0
        %v1716 = vadd.f32 %v916, %v1715
        %v1717 = vpop.f32.mrb[0].mxu0
        %v1718 = vadd.f32 %v912, %v1717
        %v1719 = vpop.f32.mrb[0].mxu0
        %v1720 = vadd.f32 %v916, %v1719
        %1721 = vmatprep.mubr.bf16.mxu0 %v792
        %1722 = vmatmul.mubr.bf16.gmra.mrb[0].mxu0 %v791
        %v1723 = vpop.f32.mrb[0].mxu0
        %v1724 = vadd.f32 %v912, %v1723
        %v1725 = vpop.f32.mrb[0].mxu0
        %v1726 = vadd.f32 %v916, %v1725
        %v1727 = vpop.f32.mrb[0].mxu0
        %v1728 = vadd.f32 %v912, %v1727
        %v1729 = vpop.f32.mrb[0].mxu0
        %v1730 = vadd.f32 %v916, %v1729
        %1731 = vmatprep.mubr.bf16.mxu0 %v794
        %1732 = vmatmul.mubr.bf16.gmra.mrb[0].mxu0 %v793
        %v1733 = vpop.f32.mrb[0].mxu0
        %v1734 = vadd.f32 %v912, %v1733
        %v1735 = vpop.f32.mrb[0].mxu0
        %v1736 = vadd.f32 %v916, %v1735
        %v1737 = vpop.f32.mrb[0].mxu0
        %v1738 = vadd.f32 %v912, %v1737
        %v1739 = vpop.f32.mrb[0].mxu0
        %v1740 = vadd.f32 %v916, %v1739
        %1741 = vdwg.mxu0
        %v1742 = vpack.c.bf16 %v1442, %v1438
        %v1743 = vpack.c.bf16 %v1444, %v1440
        %v1744 = vpack.c.bf16 %v1555, %v1551
        %v1745 = vpack.c.bf16 %v1557, %v1553
        %v1746 = vpack.c.bf16 %v1668, %v1664
        %v1747 = vpack.c.bf16 %v1670, %v1666
        %v1748 = vpack.c.bf16 %v1452, %v1448
        %v1749 = vpack.c.bf16 %v1454, %v1450
        %v1750 = vpack.c.bf16 %v1565, %v1561
        %v1751 = vpack.c.bf16 %v1567, %v1563
        %v1752 = vpack.c.bf16 %v1678, %v1674
        %v1753 = vpack.c.bf16 %v1680, %v1676
        %v1754 = vpack.c.bf16 %v1462, %v1458
        %v1755 = vpack.c.bf16 %v1464, %v1460
        %v1756 = vpack.c.bf16 %v1575, %v1571
        %v1757 = vpack.c.bf16 %v1577, %v1573
        %v1758 = vpack.c.bf16 %v1688, %v1684
        %v1759 = vpack.c.bf16 %v1690, %v1686
        %v1760 = vpack.c.bf16 %v1472, %v1468
        %v1761 = vpack.c.bf16 %v1474, %v1470
        %v1762 = vpack.c.bf16 %v1585, %v1581
        %v1763 = vpack.c.bf16 %v1587, %v1583
        %v1764 = vpack.c.bf16 %v1698, %v1694
        %v1765 = vpack.c.bf16 %v1700, %v1696
        %v1766 = vpack.c.bf16 %v1482, %v1478
        %v1767 = vpack.c.bf16 %v1484, %v1480
        %v1768 = vpack.c.bf16 %v1595, %v1591
        %v1769 = vpack.c.bf16 %v1597, %v1593
        %v1770 = vpack.c.bf16 %v1708, %v1704
        %v1771 = vpack.c.bf16 %v1710, %v1706
        %v1772 = vpack.c.bf16 %v1492, %v1488
        %v1773 = vpack.c.bf16 %v1494, %v1490
        %v1774 = vpack.c.bf16 %v1605, %v1601
        %v1775 = vpack.c.bf16 %v1607, %v1603
        %v1776 = vpack.c.bf16 %v1718, %v1714
        %v1777 = vpack.c.bf16 %v1720, %v1716
        %v1778 = vpack.c.bf16 %v1502, %v1498
        %v1779 = vpack.c.bf16 %v1504, %v1500
        %v1780 = vpack.c.bf16 %v1615, %v1611
        %v1781 = vpack.c.bf16 %v1617, %v1613
        %v1782 = vpack.c.bf16 %v1728, %v1724
        %v1783 = vpack.c.bf16 %v1730, %v1726
        %v1784 = vpack.c.bf16 %v1512, %v1508
        %v1785 = vpack.c.bf16 %v1514, %v1510
        %v1786 = vpack.c.bf16 %v1625, %v1621
        %v1787 = vpack.c.bf16 %v1627, %v1623
        %v1788 = vpack.c.bf16 %v1738, %v1734
        %v1789 = vpack.c.bf16 %v1740, %v1736
        %v1838 = vunpack.c.l.b16 %v1742
        %v1839 = vunpack.c.l.b16 %v1743
        %v1840 = vunpack.c.l.b16 %v1744
        %v1841 = vunpack.c.l.b16 %v1745
        %v1842 = vunpack.c.l.b16 %v1746
        %v1843 = vunpack.c.l.b16 %v1747
        %v1844 = vunpack.c.h.b16 %v1742
        %v1845 = vunpack.c.h.b16 %v1743
        %v1846 = vunpack.c.h.b16 %v1744
        %v1847 = vunpack.c.h.b16 %v1745
        %v1848 = vunpack.c.h.b16 %v1746
        %v1849 = vunpack.c.h.b16 %v1747
        %v1850 = vunpack.c.l.b16 %v1748
        %v1851 = vunpack.c.l.b16 %v1749
        %v1852 = vunpack.c.l.b16 %v1750
        %v1853 = vunpack.c.l.b16 %v1751
        %v1854 = vunpack.c.l.b16 %v1752
        %v1855 = vunpack.c.l.b16 %v1753
        %v1856 = vunpack.c.h.b16 %v1748
        %v1857 = vunpack.c.h.b16 %v1749
        %v1858 = vunpack.c.h.b16 %v1750
        %v1859 = vunpack.c.h.b16 %v1751
        %v1860 = vunpack.c.h.b16 %v1752
        %v1861 = vunpack.c.h.b16 %v1753
        %v1862 = vunpack.c.l.b16 %v1754
        %v1863 = vunpack.c.l.b16 %v1755
        %v1864 = vunpack.c.l.b16 %v1756
        %v1865 = vunpack.c.l.b16 %v1757
        %v1866 = vunpack.c.l.b16 %v1758
        %v1867 = vunpack.c.l.b16 %v1759
        %v1868 = vunpack.c.h.b16 %v1754
        %v1869 = vunpack.c.h.b16 %v1755
        %v1870 = vunpack.c.h.b16 %v1756
        %v1871 = vunpack.c.h.b16 %v1757
        %v1872 = vunpack.c.h.b16 %v1758
        %v1873 = vunpack.c.h.b16 %v1759
        %v1874 = vunpack.c.l.b16 %v1760
        %v1875 = vunpack.c.l.b16 %v1761
        %v1876 = vunpack.c.l.b16 %v1762
        %v1877 = vunpack.c.l.b16 %v1763
        %v1878 = vunpack.c.l.b16 %v1764
        %v1879 = vunpack.c.l.b16 %v1765
        %v1880 = vunpack.c.h.b16 %v1760
        %v1881 = vunpack.c.h.b16 %v1761
        %v1882 = vunpack.c.h.b16 %v1762
        %v1883 = vunpack.c.h.b16 %v1763
        %v1884 = vunpack.c.h.b16 %v1764
        %v1885 = vunpack.c.h.b16 %v1765
        %v1886 = vunpack.c.l.b16 %v1766
        %v1887 = vunpack.c.l.b16 %v1767
        %v1888 = vunpack.c.l.b16 %v1768
        %v1889 = vunpack.c.l.b16 %v1769
        %v1890 = vunpack.c.l.b16 %v1770
        %v1891 = vunpack.c.l.b16 %v1771
        %v1892 = vunpack.c.h.b16 %v1766
        %v1893 = vunpack.c.h.b16 %v1767
        %v1894 = vunpack.c.h.b16 %v1768
        %v1895 = vunpack.c.h.b16 %v1769
        %v1896 = vunpack.c.h.b16 %v1770
        %v1897 = vunpack.c.h.b16 %v1771
        %v1898 = vunpack.c.l.b16 %v1772
        %v1899 = vunpack.c.l.b16 %v1773
        %v1900 = vunpack.c.l.b16 %v1774
        %v1901 = vunpack.c.l.b16 %v1775
        %v1902 = vunpack.c.l.b16 %v1776
        %v1903 = vunpack.c.l.b16 %v1777
        %v1904 = vunpack.c.h.b16 %v1772
        %v1905 = vunpack.c.h.b16 %v1773
        %v1906 = vunpack.c.h.b16 %v1774
        %v1907 = vunpack.c.h.b16 %v1775
        %v1908 = vunpack.c.h.b16 %v1776
        %v1909 = vunpack.c.h.b16 %v1777
        %v1910 = vunpack.c.l.b16 %v1778
        %v1911 = vunpack.c.l.b16 %v1779
        %v1912 = vunpack.c.l.b16 %v1780
        %v1913 = vunpack.c.l.b16 %v1781
        %v1914 = vunpack.c.l.b16 %v1782
        %v1915 = vunpack.c.l.b16 %v1783
        %v1916 = vunpack.c.h.b16 %v1778
        %v1917 = vunpack.c.h.b16 %v1779
        %v1918 = vunpack.c.h.b16 %v1780
        %v1919 = vunpack.c.h.b16 %v1781
        %v1920 = vunpack.c.h.b16 %v1782
        %v1921 = vunpack.c.h.b16 %v1783
        %v1922 = vunpack.c.l.b16 %v1784
        %v1923 = vunpack.c.l.b16 %v1785
        %v1924 = vunpack.c.l.b16 %v1786
        %v1925 = vunpack.c.l.b16 %v1787
        %v1926 = vunpack.c.l.b16 %v1788
        %v1927 = vunpack.c.l.b16 %v1789
        %v1928 = vunpack.c.h.b16 %v1784
        %v1929 = vunpack.c.h.b16 %v1785
        %v1930 = vunpack.c.h.b16 %v1786
        %v1931 = vunpack.c.h.b16 %v1787
        %v1932 = vunpack.c.h.b16 %v1788
        %v1933 = vunpack.c.h.b16 %v1789
        %v1934 = vpack.c.b16 %v1839, %v1838
        %v1935 = vpack.c.b16 %v1841, %v1840
        %v1936 = vpack.c.b16 %v1843, %v1842
        %v1937 = vpack.c.b16 %v1845, %v1844
        %v1938 = vpack.c.b16 %v1847, %v1846
        %v1939 = vpack.c.b16 %v1849, %v1848
        %v1940 = vpack.c.b16 %v1851, %v1850
        %v1941 = vpack.c.b16 %v1853, %v1852
        %v1942 = vpack.c.b16 %v1855, %v1854
        %v1943 = vpack.c.b16 %v1857, %v1856
        %v1944 = vpack.c.b16 %v1859, %v1858
        %v1945 = vpack.c.b16 %v1861, %v1860
        %v1946 = vpack.c.b16 %v1863, %v1862
        %v1947 = vpack.c.b16 %v1865, %v1864
        %v1948 = vpack.c.b16 %v1867, %v1866
        %v1949 = vpack.c.b16 %v1869, %v1868
        %v1950 = vpack.c.b16 %v1871, %v1870
        %v1951 = vpack.c.b16 %v1873, %v1872
        %v1952 = vpack.c.b16 %v1875, %v1874
        %v1953 = vpack.c.b16 %v1877, %v1876
        %v1954 = vpack.c.b16 %v1879, %v1878
        %v1955 = vpack.c.b16 %v1881, %v1880
        %v1956 = vpack.c.b16 %v1883, %v1882
        %v1957 = vpack.c.b16 %v1885, %v1884
        %v1958 = vpack.c.b16 %v1887, %v1886
        %v1959 = vpack.c.b16 %v1889, %v1888
        %v1960 = vpack.c.b16 %v1891, %v1890
        %v1961 = vpack.c.b16 %v1893, %v1892
        %v1962 = vpack.c.b16 %v1895, %v1894
        %v1963 = vpack.c.b16 %v1897, %v1896
        %v1964 = vpack.c.b16 %v1899, %v1898
        %v1965 = vpack.c.b16 %v1901, %v1900
        %v1966 = vpack.c.b16 %v1903, %v1902
        %v1967 = vpack.c.b16 %v1905, %v1904
        %v1968 = vpack.c.b16 %v1907, %v1906
        %v1969 = vpack.c.b16 %v1909, %v1908
        %v1970 = vpack.c.b16 %v1911, %v1910
        %v1971 = vpack.c.b16 %v1913, %v1912
        %v1972 = vpack.c.b16 %v1915, %v1914
        %v1973 = vpack.c.b16 %v1917, %v1916
        %v1974 = vpack.c.b16 %v1919, %v1918
        %v1975 = vpack.c.b16 %v1921, %v1920
        %v1976 = vpack.c.b16 %v1923, %v1922
        %v1977 = vpack.c.b16 %v1925, %v1924
        %v1978 = vpack.c.b16 %v1927, %v1926
        %v1979 = vpack.c.b16 %v1929, %v1928
        %v1980 = vpack.c.b16 %v1931, %v1930
        %v1981 = vpack.c.b16 %v1933, %v1932
        %2030 = vst [vmem:[%s363] sm:$0xff] %v1934
        %2031 = vst [vmem:[%s363 + $0x8] sm:$0xff] %v1935
        %2032 = vst [vmem:[%s363 + $0x10] sm:$0xff] %v1936
        %2033 = vst [vmem:[%s363 + $0x18] sm:$0xff] %v1937
        %2034 = vst [vmem:[%s363 + $0x20] sm:$0xff] %v1938
        %2035 = vst [vmem:[%s363 + $0x28] sm:$0xff] %v1939
        %2036 = vst [vmem:[%s363 + $0x30] sm:$0xff] %v1940
        %2037 = vst [vmem:[%s363 + $0x38] sm:$0xff] %v1941
        %2038 = vst [vmem:[%s363 + $0x40] sm:$0xff] %v1942
        %2039 = vst [vmem:[%s363 + $0x48] sm:$0xff] %v1943
        %2040 = vst [vmem:[%s363 + $0x50] sm:$0xff] %v1944
        %2041 = vst [vmem:[%s363 + $0x58] sm:$0xff] %v1945
        %2042 = vst [vmem:[%s363 + $0x60] sm:$0xff] %v1946
        %2043 = vst [vmem:[%s363 + $0x68] sm:$0xff] %v1947
        %2044 = vst [vmem:[%s363 + $0x70] sm:$0xff] %v1948
        %2045 = vst [vmem:[%s363 + $0x78] sm:$0xff] %v1949
        %2046 = vst [vmem:[%s363 + $0x80] sm:$0xff] %v1950
        %2047 = vst [vmem:[%s363 + $0x88] sm:$0xff] %v1951
        %2048 = vst [vmem:[%s363 + $0x90] sm:$0xff] %v1952
        %2049 = vst [vmem:[%s363 + $0x98] sm:$0xff] %v1953
        %2050 = vst [vmem:[%s363 + $0xa0] sm:$0xff] %v1954
        %2051 = vst [vmem:[%s363 + $0xa8] sm:$0xff] %v1955
        %2052 = vst [vmem:[%s363 + $0xb0] sm:$0xff] %v1956
        %2053 = vst [vmem:[%s363 + $0xb8] sm:$0xff] %v1957
        %2054 = vst [vmem:[%s363 + $0xc0] sm:$0xff] %v1958
        %2055 = vst [vmem:[%s363 + $0xc8] sm:$0xff] %v1959
        %2056 = vst [vmem:[%s363 + $0xd0] sm:$0xff] %v1960
        %2057 = vst [vmem:[%s363 + $0xd8] sm:$0xff] %v1961
        %2058 = vst [vmem:[%s363 + $0xe0] sm:$0xff] %v1962
        %2059 = vst [vmem:[%s363 + $0xe8] sm:$0xff] %v1963
        %2060 = vst [vmem:[%s363 + $0xf0] sm:$0xff] %v1964
        %2061 = vst [vmem:[%s363 + $0xf8] sm:$0xff] %v1965
        %2062 = vst [vmem:[%s363 + $0x100] sm:$0xff] %v1966
        %2063 = vst [vmem:[%s363 + $0x108] sm:$0xff] %v1967
        %2064 = vst [vmem:[%s363 + $0x110] sm:$0xff] %v1968
        %2065 = vst [vmem:[%s363 + $0x118] sm:$0xff] %v1969
        %2066 = vst [vmem:[%s363 + $0x120] sm:$0xff] %v1970
        %2067 = vst [vmem:[%s363 + $0x128] sm:$0xff] %v1971
        %2068 = vst [vmem:[%s363 + $0x130] sm:$0xff] %v1972
        %2069 = vst [vmem:[%s363 + $0x138] sm:$0xff] %v1973
        %2070 = vst [vmem:[%s363 + $0x140] sm:$0xff] %v1974
        %2071 = vst [vmem:[%s363 + $0x148] sm:$0xff] %v1975
        %2072 = vst [vmem:[%s363 + $0x150] sm:$0xff] %v1976
        %2073 = vst [vmem:[%s363 + $0x158] sm:$0xff] %v1977
        %2074 = vst [vmem:[%s363 + $0x160] sm:$0xff] %v1978
        %2075 = vst [vmem:[%s363 + $0x168] sm:$0xff] %v1979
        %2076 = vst [vmem:[%s363 + $0x170] sm:$0xff] %v1980
        %2077 = vst [vmem:[%s363 + $0x178] sm:$0xff] %v1981
        %s2078 = sand.u32 %s169, 1
        %s2079 = scalar_lea.sflag [#allocation4], %s2078
        %s2080 = sand.u32 %s169, 1
        %s2081 = smul.addr %s2080, 256
        %s2082 = scalar_lea.vmem [#allocation11], %s2081
        %s2083 = sand.u32 %s197, 1
        %s2084 = scalar_lea.sflag [#allocation13], %s2083
        %s2085 = sand.u32 %s197, 1
        %s2086 = smul.addr %s2085, 384
        %s2087 = scalar_lea.vmem [#allocation12], %s2086
        // Predicated region
        $region61: #{tpu_custom_call.1} parent=39 // pred_check
          %p2088 = pneg %p179
        $region62: #{tpu_custom_call.1} parent=39 // pred_check_branch
          %2090 = sbr.rel (%p2088) target = $region64
        $region63: #{tpu_custom_call.1} parent=39 // pred_region
          %s2091 = smul.u32 16, %s33
          %s2093 = ssub.s32 4096, 4096
          %2094 = vsyncadd %s2079, %s2093
          %s2095 = smul.addr %s2091, 2
          %s2096 = smul.addr %s2095, 128
          %s2097 = scalar_lea.hbm %s5, %s2096
          %s2098 = sshll.u32 %s2082, 4
          %s2099 = int_to_ptr.vmem [resolvable:$true] %s2098
          %2104 = dma.vmem_to_hbm [thread:$0]  %s2099, 4096, %s2097, %s2079, 256, 256, 16
        $region64: #{tpu_custom_call.1} parent=39 // pred_fallthru
          _
        // Predicated region
        $region65: #{tpu_custom_call.1} parent=39 // pred_check
          %p2105 = pneg %p207
        $region66: #{tpu_custom_call.1} parent=39 // pred_check_branch
          %2107 = sbr.rel (%p2105) target = $region68
        $region67: #{tpu_custom_call.1} parent=39 // pred_region
          %s2108 = smul.u32 16, %s33
          %s2109 = smul.u32 6, %s34
          %s2111 = ssub.s32 6144, 6144
          %2112 = vsyncadd %s2084, %s2111
          %s2113 = smul.addr %s2108, 6
          %s2114 = sadd.s32 %s2109, %s2113
          %s2115 = smul.addr %s2114, 64
          %s2116 = scalar_lea.hbm %s6, %s2115
          %s2117 = sshll.u32 %s2087, 4
          %s2118 = int_to_ptr.vmem [resolvable:$true] %s2117
          %2123 = dma.vmem_to_hbm [thread:$0]  %s2118, 6144, %s2116, %s2084, 384, 384, 24
        $region68: #{tpu_custom_call.1} parent=39 // pred_fallthru
          _
      $region40: #{tpu_custom_call.1} parent=5 // pred_fallthru
        _
      %p2124 = scmp.le.s32.totalorder 2, %s24
      // Predicated region
      $region69: #{tpu_custom_call.1} parent=5 // pred_check
        %p2125 = pneg %p2124
      $region70: #{tpu_custom_call.1} parent=5 // pred_check_branch
        %2127 = sbr.rel (%p2125) target = $region72
      $region71: #{tpu_custom_call.1} parent=5 // pred_region
        %s2128 = ssub.s32 %s24, 2
        // Predicated region
        $region73: #{tpu_custom_call.1} parent=71 // pred_check
          %p2129 = pneg %p185
        $region74: #{tpu_custom_call.1} parent=71 // pred_check_branch
          %2131 = sbr.rel (%p2129) target = $region76
        $region75: #{tpu_custom_call.1} parent=71 // pred_region
          %s2132 = sand.u32 %s170, 1
          %s2133 = scalar_lea.sflag [#allocation4], %s2132
          %s2134 = sand.u32 %s170, 1
          %s2135 = smul.addr %s2134, 256
          %s2136 = scalar_lea.vmem [#allocation11], %s2135
          %2137 = dma.done %s2133, 4096
        $region76: #{tpu_custom_call.1} parent=71 // pred_fallthru
          _
        // Predicated region
        $region77: #{tpu_custom_call.1} parent=71 // pred_check
          %p2138 = pneg %p213
        $region78: #{tpu_custom_call.1} parent=71 // pred_check_branch
          %2140 = sbr.rel (%p2138) target = $region80
        $region79: #{tpu_custom_call.1} parent=71 // pred_region
          %s2141 = sand.u32 %s198, 1
          %s2142 = scalar_lea.sflag [#allocation13], %s2141
          %s2143 = sand.u32 %s198, 1
          %s2144 = smul.addr %s2143, 384
          %s2145 = scalar_lea.vmem [#allocation12], %s2144
          %2146 = dma.done %s2142, 6144
        $region80: #{tpu_custom_call.1} parent=71 // pred_fallthru
          _
      $region72: #{tpu_custom_call.1} parent=5 // pred_fallthru
        _
    $region6: #{tpu_custom_call.1} parent=1 // loop_footer
      %s28 = sadd.s32 1, %s24
    $region7: #{tpu_custom_call.1} parent=1 // loop_footer_branch
      %23 = sbr.rel target = $region3
    $region8: #{tpu_custom_call.1} parent=1 // loop_exit
      _
    %2147 = vsyncpa [#allocation3], 1
    %s2148 = scalar_lea.sflag [#allocation3], 1
    %2149 = vsyncpa %s2148, 1
    %2150 = vsyncpa [#allocation6], 1
    %2151 = vsyncpa [#allocation9], 1
    %2152 = vsyncpa [#allocation4], 1
    %s2153 = scalar_lea.sflag [#allocation4], 1
    %2154 = vsyncpa %s2153, 1
    %2155 = vsyncpa [#allocation13], 1
    %s2156 = scalar_lea.sflag [#allocation13], 1
    %2157 = vsyncpa %s2156, 1

</llo_original>
